<compile_context>
chip_gen: v6e
topology: v6e:2x2x1
jax: 0.10.0
libtpu: 0.0.40
codegen_flags: <defaults>
</compile_context>

<pallas_src>
import functools

import jax
import jax.numpy as jnp
from jax.experimental import pallas as pl
from jax.experimental.pallas import tpu as pltpu


def _attention_kernel(x_ref, wq_ref, wk_ref, wv_ref, wo_ref, bo_ref, o_ref,
                      *, num_heads, head_dim, bt, seq, dim):
    """One grid step == `bt` batch elements.

    x_ref : (bt, N, C)        bf16
    wq_ref: (C, H*hd)         bf16 (qk scale already folded in)
    wk_ref: (C, H*hd)         bf16
    wv_ref: (C, H*hd)         bf16
    wo_ref: (H*hd, C)         bf16
    bo_ref: (1, C)            f32
    o_ref : (bt, N, C)        f32
    """
    rows = bt * seq
    ahd = num_heads * head_dim

    # Leading-axis merge only (lane dim untouched) -> cheap.
    xf = x_ref[...].reshape(rows, dim)                            # (rows, C) bf16

    # ---- fused, lane-dense projections (one MXU matmul each) ----
    q = jnp.dot(xf, wq_ref[...], preferred_element_type=jnp.float32)
    k = jnp.dot(xf, wk_ref[...], preferred_element_type=jnp.float32)
    v = jnp.dot(xf, wv_ref[...], preferred_element_type=jnp.float32)

    # Leading-dim split only (rows -> bt, N); lane dim stays H*hd.
    q = q.reshape(bt, seq, ahd).astype(jnp.bfloat16)
    k = k.reshape(bt, seq, ahd).astype(jnp.bfloat16)
    v = v.reshape(bt, seq, ahd).astype(jnp.bfloat16)

    # ---- attention, one head at a time (static unroll; one (bt,N,N) score
    # tile live at a time). Per-head q/k/v are static lane slices.
    ctx_heads = []
    for h in range(num_heads):
        sl = slice(h * head_dim, (h + 1) * head_dim)
        qh = q[:, :, sl]                                          # (bt, N, hd)
        kh = k[:, :, sl]
        vh = v[:, :, sl]

        # Batched scores over the batch tile (proven Mosaic einsum pattern).
        s = jnp.einsum("bnd,bmd->bnm", qh, kh,
                       preferred_element_type=jnp.float32)        # (bt, N, N) f32
        # Numerically-stable softmax, kept in f32 (v5e has no bf16 VPU/EUP).
        s = s - jnp.max(s, axis=-1, keepdims=True)
        p = jnp.exp(s)
        p = p * pl.reciprocal(jnp.sum(p, axis=-1, keepdims=True), approx=True)

        ctx_heads.append(
            jnp.einsum("bnm,bmd->bnd", p.astype(jnp.bfloat16), vh,
                       preferred_element_type=jnp.float32))       # (bt, N, hd)

    # Lane-concat the head contexts -> single dense output projection.
    ctx = jnp.concatenate(ctx_heads, axis=-1)                     # (bt, N, H*hd)
    ctx = ctx.reshape(rows, ahd).astype(jnp.bfloat16)

    y = jnp.dot(ctx, wo_ref[...], preferred_element_type=jnp.float32)
    y = y + bo_ref[...]                                           # proj bias
    o_ref[...] = y.reshape(bt, seq, dim).astype(o_ref.dtype)


def _pick_batch_tile(batch, seq, target_rows=256):
    """Largest divisor of `batch` giving ~target_rows rows per step, while
    keeping >=2 grid steps when possible (v7x: 2 TensorCores share the
    parallel axis)."""
    bt = max(1, min(batch, max(1, target_rows // max(seq, 1))))
    while batch % bt:
        bt -= 1
    while bt > 1 and batch // bt < 2:
        bt = bt // 2
        while bt > 1 and batch % bt:
            bt -= 1
    return max(bt, 1)


def attention_pallas(x, w_qkv, w_proj, b_proj, *, num_heads, head_dim):
    """x: (B, N, C) f32.  w_qkv: (C, 3*H*hd).  w_proj: (H*hd, C).  b_proj: (C,)."""
    B, N, C = x.shape
    ahd = num_heads * head_dim
    scale = head_dim ** (-0.5)

    # ---- host-side parameter prep (one-time layout / dtype transforms) ----
    # torch's qkv output features are ordered (which, head, hd) with `which`
    # major, so plain column slices are already head-major.
    wq = (w_qkv[:, :ahd] * scale).astype(jnp.bfloat16)     # fold qk scale into Q
    wk = w_qkv[:, ahd:2 * ahd].astype(jnp.bfloat16)
    wv = w_qkv[:, 2 * ahd:].astype(jnp.bfloat16)
    wo = w_proj.astype(jnp.bfloat16)                       # (H*hd, C)
    b2 = b_proj.reshape(1, C).astype(jnp.float32)
    x_bf = x.astype(jnp.bfloat16)           # bf16 activations: MXU-native, halves DMA

    bt = _pick_batch_tile(B, N)
    grid = (B // bt,)

    kernel = functools.partial(_attention_kernel, num_heads=num_heads,
                               head_dim=head_dim, bt=bt, seq=N, dim=C)

    # Explicit VMEM budget (v7x: 64 MiB physical, 32 MiB default scoped).
    # Weight blocks use a constant index_map so they are fetched once; we
    # still account for default double-buffering.
    w_bytes = 2 * (3 * C * ahd + ahd * C) + 4 * C
    blk_bytes = bt * N * C * (2 * 2 + 4 * 2)           # bf16 in + f32 out, double-buffered
    inter_bytes = 10 * bt * N * ahd * 4 + 4 * bt * N * N * 4 + 2 * bt * N * C * 4
    est = blk_bytes + 2 * w_bytes + inter_bytes
    vmem_limit = int(min(max(est, 32 * 1024 * 1024), 64 * 1024 * 1024))

    return pl.pallas_call(
        kernel,
        out_shape=jax.ShapeDtypeStruct((B, N, C), x.dtype),
        grid_spec=pltpu.PrefetchScalarGridSpec(
            num_scalar_prefetch=0,
            grid=grid,
            in_specs=[
                pl.BlockSpec((bt, N, C), lambda b: (b, 0, 0)),     # x
                pl.BlockSpec((C, ahd), lambda b: (0, 0)),          # wq (scaled)
                pl.BlockSpec((C, ahd), lambda b: (0, 0)),          # wk
                pl.BlockSpec((C, ahd), lambda b: (0, 0)),          # wv
                pl.BlockSpec((ahd, C), lambda b: (0, 0)),          # w_proj
                pl.BlockSpec((1, C), lambda b: (0, 0)),            # b_proj
            ],
            out_specs=pl.BlockSpec((bt, N, C), lambda b: (b, 0, 0)),
        ),
        compiler_params=pltpu.CompilerParams(
            dimension_semantics=("parallel",),
            vmem_limit_bytes=vmem_limit),
    )(x_bf, wq, wk, wv, wo, b2)


def attention_ref(x, w_qkv, w_proj, b_proj, *, num_heads, head_dim):
    """Pure-JAX f32 reference mirroring the PyTorch forward exactly."""
    B, N, C = x.shape
    scale = head_dim ** (-0.5)
    qkv = x @ w_qkv                                            # (B, N, 3*AHD)
    qkv = qkv.reshape(B, N, 3, num_heads, head_dim)
    qkv = jnp.transpose(qkv, (2, 0, 3, 1, 4))                  # (3, B, H, N, hd)
    q, k, v = qkv[0] * scale, qkv[1], qkv[2]
    attn = jnp.einsum("bhnd,bhmd->bhnm", q, k)
    attn = jax.nn.softmax(attn, axis=-1)
    out = jnp.einsum("bhnm,bhmd->bhnd", attn, v)               # (B, H, N, hd)
    out = jnp.transpose(out, (0, 2, 1, 3)).reshape(B, N, num_heads * head_dim)
    return out @ w_proj + b_proj


if __name__ == "__main__":
    # Small shapes consistent with the module: dim=32, num_heads=8 -> head_dim=4
    B, N, C = 2, 8, 32
    num_heads = 8
    head_dim = C // num_heads
    ahd = num_heads * head_dim

    key = jax.random.PRNGKey(0)
    kx, kqkv, kproj, kb = jax.random.split(key, 4)

    x = jax.random.normal(kx, (B, N, C), dtype=jnp.float32)
    # Deterministic parameter init (qkv has no bias: qkv_bias=False default).
    w_qkv = jax.random.normal(kqkv, (C, 3 * ahd), dtype=jnp.float32) * 0.05
    w_proj = jax.random.normal(kproj, (ahd, C), dtype=jnp.float32) * 0.05
    b_proj = jax.random.normal(kb, (C,), dtype=jnp.float32) * 0.01

    out = attention_pallas(x, w_qkv, w_proj, b_proj,
                           num_heads=num_heads, head_dim=head_dim)
    out = jax.block_until_ready(out)

    ref = attention_ref(x, w_qkv, w_proj, b_proj,
                        num_heads=num_heads, head_dim=head_dim)
    assert out.shape == (B, N, C)
    # bf16 matmul operands + approx reciprocal -> compare at bf16-level tolerance
    assert jnp.allclose(out, ref, atol=2e-2, rtol=2e-2), "mismatch vs reference"

    print("KERNEL_OK")
</pallas_src>

<mosaic_0001>
module attributes {stable_mosaic.version = 11 : i64} {
  func.func @_attention_kernel(%arg0: i32, %arg1: memref<1x8x32xbf16, #tpu.memory_space<vmem>>, %arg2: memref<32x32xbf16, #tpu.memory_space<vmem>>, %arg3: memref<32x32xbf16, #tpu.memory_space<vmem>>, %arg4: memref<32x32xbf16, #tpu.memory_space<vmem>>, %arg5: memref<32x32xbf16, #tpu.memory_space<vmem>>, %arg6: memref<1x32xf32, #tpu.memory_space<vmem>>, %arg7: memref<1x8x32xf32, #tpu.memory_space<vmem>>) attributes {dimension_semantics = [#tpu.dimension_semantics<parallel>], iteration_bounds = array<i64: 2>, scalar_prefetch = 0 : i64, scratch_operands = 0 : i64, tpu.core_type = #tpu.core_type<tc>, window_params = [{transform_indices = @transform_0, window_bounds = array<i64: 1, 8, 32>}, {pipeline_mode = #tpu.pipeline_mode<synchronous>, transform_indices = @transform_1, window_bounds = array<i64: 32, 32>}, {pipeline_mode = #tpu.pipeline_mode<synchronous>, transform_indices = @transform_2, window_bounds = array<i64: 32, 32>}, {pipeline_mode = #tpu.pipeline_mode<synchronous>, transform_indices = @transform_3, window_bounds = array<i64: 32, 32>}, {pipeline_mode = #tpu.pipeline_mode<synchronous>, transform_indices = @transform_4, window_bounds = array<i64: 32, 32>}, {pipeline_mode = #tpu.pipeline_mode<synchronous>, transform_indices = @transform_5, window_bounds = array<i64: 1, 32>}, {transform_indices = @transform_6, window_bounds = array<i64: 1, 8, 32>}]} {
    %c0 = arith.constant 0 : index
    %c0_0 = arith.constant 0 : index
    %c0_1 = arith.constant 0 : index
    %0 = vector.load %arg1[%c0, %c0_0, %c0_1] : memref<1x8x32xbf16, #tpu.memory_space<vmem>>, vector<1x8x32xbf16>
    %1 = vector.shape_cast %0 : vector<1x8x32xbf16> to vector<8x32xbf16>
    %c0_2 = arith.constant 0 : index
    %c0_3 = arith.constant 0 : index
    %2 = vector.load %arg2[%c0_2, %c0_3] : memref<32x32xbf16, #tpu.memory_space<vmem>>, vector<32x32xbf16>
    %cst = arith.constant dense<0.000000e+00> : vector<8x32xf32>
    %3 = tpu.matmul %1, %2, %cst {dimension_numbers = #tpu.dot_dimension_numbers<[1], [0], [0], [1], [0, 0, 1, 1], [], []>} : vector<8x32xbf16>, vector<32x32xbf16>, vector<8x32xf32> -> vector<8x32xf32>
    %c0_4 = arith.constant 0 : index
    %c0_5 = arith.constant 0 : index
    %4 = vector.load %arg3[%c0_4, %c0_5] : memref<32x32xbf16, #tpu.memory_space<vmem>>, vector<32x32xbf16>
    %cst_6 = arith.constant dense<0.000000e+00> : vector<8x32xf32>
    %5 = tpu.matmul %1, %4, %cst_6 {dimension_numbers = #tpu.dot_dimension_numbers<[1], [0], [0], [1], [0, 0, 1, 1], [], []>} : vector<8x32xbf16>, vector<32x32xbf16>, vector<8x32xf32> -> vector<8x32xf32>
    %c0_7 = arith.constant 0 : index
    %c0_8 = arith.constant 0 : index
    %6 = vector.load %arg4[%c0_7, %c0_8] : memref<32x32xbf16, #tpu.memory_space<vmem>>, vector<32x32xbf16>
    %cst_9 = arith.constant dense<0.000000e+00> : vector<8x32xf32>
    %7 = tpu.matmul %1, %6, %cst_9 {dimension_numbers = #tpu.dot_dimension_numbers<[1], [0], [0], [1], [0, 0, 1, 1], [], []>} : vector<8x32xbf16>, vector<32x32xbf16>, vector<8x32xf32> -> vector<8x32xf32>
    %8 = vector.shape_cast %3 : vector<8x32xf32> to vector<1x8x32xf32>
    %9 = arith.truncf %8 : vector<1x8x32xf32> to vector<1x8x32xbf16>
    %10 = vector.shape_cast %5 : vector<8x32xf32> to vector<1x8x32xf32>
    %11 = arith.truncf %10 : vector<1x8x32xf32> to vector<1x8x32xbf16>
    %12 = vector.shape_cast %7 : vector<8x32xf32> to vector<1x8x32xf32>
    %13 = arith.truncf %12 : vector<1x8x32xf32> to vector<1x8x32xbf16>
    %14 = vector.extract_strided_slice %9 {offsets = [0, 0, 0], sizes = [1, 8, 4], strides = [1, 1, 1]} : vector<1x8x32xbf16> to vector<1x8x4xbf16>
    %15 = vector.extract_strided_slice %11 {offsets = [0, 0, 0], sizes = [1, 8, 4], strides = [1, 1, 1]} : vector<1x8x32xbf16> to vector<1x8x4xbf16>
    %16 = vector.extract_strided_slice %13 {offsets = [0, 0, 0], sizes = [1, 8, 4], strides = [1, 1, 1]} : vector<1x8x32xbf16> to vector<1x8x4xbf16>
    "tpu.trace_start"() <{level = 10 : i32, message = "bnd,bmd->bnm"}> : () -> ()
    %cst_10 = arith.constant dense<0.000000e+00> : vector<1x8x8xf32>
    %17 = tpu.matmul %14, %15, %cst_10 {dimension_numbers = #tpu.dot_dimension_numbers<[2], [2], [1], [1], [0, 0, 0, 1, 1, 1], [0], [0]>} : vector<1x8x4xbf16>, vector<1x8x4xbf16>, vector<1x8x8xf32> -> vector<1x8x8xf32>
    "tpu.trace_stop"() : () -> ()
    %cst_11 = arith.constant dense<0xFF800000> : vector<1x8xf32>
    %18 = vector.multi_reduction <maximumf>, %17, %cst_11 [2] : vector<1x8x8xf32> to vector<1x8xf32>
    %19 = vector.shape_cast %18 : vector<1x8xf32> to vector<1x8x1xf32>
    %20 = vector.broadcast %19 : vector<1x8x1xf32> to vector<1x8x8xf32>
    %21 = arith.subf %17, %20 : vector<1x8x8xf32>
    %22 = math.exp %21 : vector<1x8x8xf32>
    %cst_12 = arith.constant dense<0.000000e+00> : vector<1x8xf32>
    %23 = vector.multi_reduction <add>, %22, %cst_12 [2] : vector<1x8x8xf32> to vector<1x8xf32>
    %24 = vector.shape_cast %23 : vector<1x8xf32> to vector<1x8x1xf32>
    %25 = tpu.reciprocal %24 {approx = true} : vector<1x8x1xf32> -> vector<1x8x1xf32>
    %26 = vector.broadcast %25 : vector<1x8x1xf32> to vector<1x8x8xf32>
    %27 = arith.mulf %22, %26 : vector<1x8x8xf32>
    %28 = arith.truncf %27 : vector<1x8x8xf32> to vector<1x8x8xbf16>
    "tpu.trace_start"() <{level = 10 : i32, message = "bnm,bmd->bnd"}> : () -> ()
    %cst_13 = arith.constant dense<0.000000e+00> : vector<1x8x4xf32>
    %29 = tpu.matmul %28, %16, %cst_13 {dimension_numbers = #tpu.dot_dimension_numbers<[2], [1], [1], [2], [0, 0, 0, 1, 1, 2], [0], [0]>} : vector<1x8x8xbf16>, vector<1x8x4xbf16>, vector<1x8x4xf32> -> vector<1x8x4xf32>
    "tpu.trace_stop"() : () -> ()
    %30 = vector.extract_strided_slice %9 {offsets = [0, 0, 4], sizes = [1, 8, 4], strides = [1, 1, 1]} : vector<1x8x32xbf16> to vector<1x8x4xbf16>
    %31 = vector.extract_strided_slice %11 {offsets = [0, 0, 4], sizes = [1, 8, 4], strides = [1, 1, 1]} : vector<1x8x32xbf16> to vector<1x8x4xbf16>
    %32 = vector.extract_strided_slice %13 {offsets = [0, 0, 4], sizes = [1, 8, 4], strides = [1, 1, 1]} : vector<1x8x32xbf16> to vector<1x8x4xbf16>
    "tpu.trace_start"() <{level = 10 : i32, message = "bnd,bmd->bnm"}> : () -> ()
    %cst_14 = arith.constant dense<0.000000e+00> : vector<1x8x8xf32>
    %33 = tpu.matmul %30, %31, %cst_14 {dimension_numbers = #tpu.dot_dimension_numbers<[2], [2], [1], [1], [0, 0, 0, 1, 1, 1], [0], [0]>} : vector<1x8x4xbf16>, vector<1x8x4xbf16>, vector<1x8x8xf32> -> vector<1x8x8xf32>
    "tpu.trace_stop"() : () -> ()
    %cst_15 = arith.constant dense<0xFF800000> : vector<1x8xf32>
    %34 = vector.multi_reduction <maximumf>, %33, %cst_15 [2] : vector<1x8x8xf32> to vector<1x8xf32>
    %35 = vector.shape_cast %34 : vector<1x8xf32> to vector<1x8x1xf32>
    %36 = vector.broadcast %35 : vector<1x8x1xf32> to vector<1x8x8xf32>
    %37 = arith.subf %33, %36 : vector<1x8x8xf32>
    %38 = math.exp %37 : vector<1x8x8xf32>
    %cst_16 = arith.constant dense<0.000000e+00> : vector<1x8xf32>
    %39 = vector.multi_reduction <add>, %38, %cst_16 [2] : vector<1x8x8xf32> to vector<1x8xf32>
    %40 = vector.shape_cast %39 : vector<1x8xf32> to vector<1x8x1xf32>
    %41 = tpu.reciprocal %40 {approx = true} : vector<1x8x1xf32> -> vector<1x8x1xf32>
    %42 = vector.broadcast %41 : vector<1x8x1xf32> to vector<1x8x8xf32>
    %43 = arith.mulf %38, %42 : vector<1x8x8xf32>
    %44 = arith.truncf %43 : vector<1x8x8xf32> to vector<1x8x8xbf16>
    "tpu.trace_start"() <{level = 10 : i32, message = "bnm,bmd->bnd"}> : () -> ()
    %cst_17 = arith.constant dense<0.000000e+00> : vector<1x8x4xf32>
    %45 = tpu.matmul %44, %32, %cst_17 {dimension_numbers = #tpu.dot_dimension_numbers<[2], [1], [1], [2], [0, 0, 0, 1, 1, 2], [0], [0]>} : vector<1x8x8xbf16>, vector<1x8x4xbf16>, vector<1x8x4xf32> -> vector<1x8x4xf32>
    "tpu.trace_stop"() : () -> ()
    %46 = vector.extract_strided_slice %9 {offsets = [0, 0, 8], sizes = [1, 8, 4], strides = [1, 1, 1]} : vector<1x8x32xbf16> to vector<1x8x4xbf16>
    %47 = vector.extract_strided_slice %11 {offsets = [0, 0, 8], sizes = [1, 8, 4], strides = [1, 1, 1]} : vector<1x8x32xbf16> to vector<1x8x4xbf16>
    %48 = vector.extract_strided_slice %13 {offsets = [0, 0, 8], sizes = [1, 8, 4], strides = [1, 1, 1]} : vector<1x8x32xbf16> to vector<1x8x4xbf16>
    "tpu.trace_start"() <{level = 10 : i32, message = "bnd,bmd->bnm"}> : () -> ()
    %cst_18 = arith.constant dense<0.000000e+00> : vector<1x8x8xf32>
    %49 = tpu.matmul %46, %47, %cst_18 {dimension_numbers = #tpu.dot_dimension_numbers<[2], [2], [1], [1], [0, 0, 0, 1, 1, 1], [0], [0]>} : vector<1x8x4xbf16>, vector<1x8x4xbf16>, vector<1x8x8xf32> -> vector<1x8x8xf32>
    "tpu.trace_stop"() : () -> ()
    %cst_19 = arith.constant dense<0xFF800000> : vector<1x8xf32>
    %50 = vector.multi_reduction <maximumf>, %49, %cst_19 [2] : vector<1x8x8xf32> to vector<1x8xf32>
    %51 = vector.shape_cast %50 : vector<1x8xf32> to vector<1x8x1xf32>
    %52 = vector.broadcast %51 : vector<1x8x1xf32> to vector<1x8x8xf32>
    %53 = arith.subf %49, %52 : vector<1x8x8xf32>
    %54 = math.exp %53 : vector<1x8x8xf32>
    %cst_20 = arith.constant dense<0.000000e+00> : vector<1x8xf32>
    %55 = vector.multi_reduction <add>, %54, %cst_20 [2] : vector<1x8x8xf32> to vector<1x8xf32>
    %56 = vector.shape_cast %55 : vector<1x8xf32> to vector<1x8x1xf32>
    %57 = tpu.reciprocal %56 {approx = true} : vector<1x8x1xf32> -> vector<1x8x1xf32>
    %58 = vector.broadcast %57 : vector<1x8x1xf32> to vector<1x8x8xf32>
    %59 = arith.mulf %54, %58 : vector<1x8x8xf32>
    %60 = arith.truncf %59 : vector<1x8x8xf32> to vector<1x8x8xbf16>
    "tpu.trace_start"() <{level = 10 : i32, message = "bnm,bmd->bnd"}> : () -> ()
    %cst_21 = arith.constant dense<0.000000e+00> : vector<1x8x4xf32>
    %61 = tpu.matmul %60, %48, %cst_21 {dimension_numbers = #tpu.dot_dimension_numbers<[2], [1], [1], [2], [0, 0, 0, 1, 1, 2], [0], [0]>} : vector<1x8x8xbf16>, vector<1x8x4xbf16>, vector<1x8x4xf32> -> vector<1x8x4xf32>
    "tpu.trace_stop"() : () -> ()
    %62 = vector.extract_strided_slice %9 {offsets = [0, 0, 12], sizes = [1, 8, 4], strides = [1, 1, 1]} : vector<1x8x32xbf16> to vector<1x8x4xbf16>
    %63 = vector.extract_strided_slice %11 {offsets = [0, 0, 12], sizes = [1, 8, 4], strides = [1, 1, 1]} : vector<1x8x32xbf16> to vector<1x8x4xbf16>
    %64 = vector.extract_strided_slice %13 {offsets = [0, 0, 12], sizes = [1, 8, 4], strides = [1, 1, 1]} : vector<1x8x32xbf16> to vector<1x8x4xbf16>
    "tpu.trace_start"() <{level = 10 : i32, message = "bnd,bmd->bnm"}> : () -> ()
    %cst_22 = arith.constant dense<0.000000e+00> : vector<1x8x8xf32>
    %65 = tpu.matmul %62, %63, %cst_22 {dimension_numbers = #tpu.dot_dimension_numbers<[2], [2], [1], [1], [0, 0, 0, 1, 1, 1], [0], [0]>} : vector<1x8x4xbf16>, vector<1x8x4xbf16>, vector<1x8x8xf32> -> vector<1x8x8xf32>
    "tpu.trace_stop"() : () -> ()
    %cst_23 = arith.constant dense<0xFF800000> : vector<1x8xf32>
    %66 = vector.multi_reduction <maximumf>, %65, %cst_23 [2] : vector<1x8x8xf32> to vector<1x8xf32>
    %67 = vector.shape_cast %66 : vector<1x8xf32> to vector<1x8x1xf32>
    %68 = vector.broadcast %67 : vector<1x8x1xf32> to vector<1x8x8xf32>
    %69 = arith.subf %65, %68 : vector<1x8x8xf32>
    %70 = math.exp %69 : vector<1x8x8xf32>
    %cst_24 = arith.constant dense<0.000000e+00> : vector<1x8xf32>
    %71 = vector.multi_reduction <add>, %70, %cst_24 [2] : vector<1x8x8xf32> to vector<1x8xf32>
    %72 = vector.shape_cast %71 : vector<1x8xf32> to vector<1x8x1xf32>
    %73 = tpu.reciprocal %72 {approx = true} : vector<1x8x1xf32> -> vector<1x8x1xf32>
    %74 = vector.broadcast %73 : vector<1x8x1xf32> to vector<1x8x8xf32>
    %75 = arith.mulf %70, %74 : vector<1x8x8xf32>
    %76 = arith.truncf %75 : vector<1x8x8xf32> to vector<1x8x8xbf16>
    "tpu.trace_start"() <{level = 10 : i32, message = "bnm,bmd->bnd"}> : () -> ()
    %cst_25 = arith.constant dense<0.000000e+00> : vector<1x8x4xf32>
    %77 = tpu.matmul %76, %64, %cst_25 {dimension_numbers = #tpu.dot_dimension_numbers<[2], [1], [1], [2], [0, 0, 0, 1, 1, 2], [0], [0]>} : vector<1x8x8xbf16>, vector<1x8x4xbf16>, vector<1x8x4xf32> -> vector<1x8x4xf32>
    "tpu.trace_stop"() : () -> ()
    %78 = vector.extract_strided_slice %9 {offsets = [0, 0, 16], sizes = [1, 8, 4], strides = [1, 1, 1]} : vector<1x8x32xbf16> to vector<1x8x4xbf16>
    %79 = vector.extract_strided_slice %11 {offsets = [0, 0, 16], sizes = [1, 8, 4], strides = [1, 1, 1]} : vector<1x8x32xbf16> to vector<1x8x4xbf16>
    %80 = vector.extract_strided_slice %13 {offsets = [0, 0, 16], sizes = [1, 8, 4], strides = [1, 1, 1]} : vector<1x8x32xbf16> to vector<1x8x4xbf16>
    "tpu.trace_start"() <{level = 10 : i32, message = "bnd,bmd->bnm"}> : () -> ()
    %cst_26 = arith.constant dense<0.000000e+00> : vector<1x8x8xf32>
    %81 = tpu.matmul %78, %79, %cst_26 {dimension_numbers = #tpu.dot_dimension_numbers<[2], [2], [1], [1], [0, 0, 0, 1, 1, 1], [0], [0]>} : vector<1x8x4xbf16>, vector<1x8x4xbf16>, vector<1x8x8xf32> -> vector<1x8x8xf32>
    "tpu.trace_stop"() : () -> ()
    %cst_27 = arith.constant dense<0xFF800000> : vector<1x8xf32>
    %82 = vector.multi_reduction <maximumf>, %81, %cst_27 [2] : vector<1x8x8xf32> to vector<1x8xf32>
    %83 = vector.shape_cast %82 : vector<1x8xf32> to vector<1x8x1xf32>
    %84 = vector.broadcast %83 : vector<1x8x1xf32> to vector<1x8x8xf32>
    %85 = arith.subf %81, %84 : vector<1x8x8xf32>
    %86 = math.exp %85 : vector<1x8x8xf32>
    %cst_28 = arith.constant dense<0.000000e+00> : vector<1x8xf32>
    %87 = vector.multi_reduction <add>, %86, %cst_28 [2] : vector<1x8x8xf32> to vector<1x8xf32>
    %88 = vector.shape_cast %87 : vector<1x8xf32> to vector<1x8x1xf32>
    %89 = tpu.reciprocal %88 {approx = true} : vector<1x8x1xf32> -> vector<1x8x1xf32>
    %90 = vector.broadcast %89 : vector<1x8x1xf32> to vector<1x8x8xf32>
    %91 = arith.mulf %86, %90 : vector<1x8x8xf32>
    %92 = arith.truncf %91 : vector<1x8x8xf32> to vector<1x8x8xbf16>
    "tpu.trace_start"() <{level = 10 : i32, message = "bnm,bmd->bnd"}> : () -> ()
    %cst_29 = arith.constant dense<0.000000e+00> : vector<1x8x4xf32>
    %93 = tpu.matmul %92, %80, %cst_29 {dimension_numbers = #tpu.dot_dimension_numbers<[2], [1], [1], [2], [0, 0, 0, 1, 1, 2], [0], [0]>} : vector<1x8x8xbf16>, vector<1x8x4xbf16>, vector<1x8x4xf32> -> vector<1x8x4xf32>
    "tpu.trace_stop"() : () -> ()
    %94 = vector.extract_strided_slice %9 {offsets = [0, 0, 20], sizes = [1, 8, 4], strides = [1, 1, 1]} : vector<1x8x32xbf16> to vector<1x8x4xbf16>
    %95 = vector.extract_strided_slice %11 {offsets = [0, 0, 20], sizes = [1, 8, 4], strides = [1, 1, 1]} : vector<1x8x32xbf16> to vector<1x8x4xbf16>
    %96 = vector.extract_strided_slice %13 {offsets = [0, 0, 20], sizes = [1, 8, 4], strides = [1, 1, 1]} : vector<1x8x32xbf16> to vector<1x8x4xbf16>
    "tpu.trace_start"() <{level = 10 : i32, message = "bnd,bmd->bnm"}> : () -> ()
    %cst_30 = arith.constant dense<0.000000e+00> : vector<1x8x8xf32>
    %97 = tpu.matmul %94, %95, %cst_30 {dimension_numbers = #tpu.dot_dimension_numbers<[2], [2], [1], [1], [0, 0, 0, 1, 1, 1], [0], [0]>} : vector<1x8x4xbf16>, vector<1x8x4xbf16>, vector<1x8x8xf32> -> vector<1x8x8xf32>
    "tpu.trace_stop"() : () -> ()
    %cst_31 = arith.constant dense<0xFF800000> : vector<1x8xf32>
    %98 = vector.multi_reduction <maximumf>, %97, %cst_31 [2] : vector<1x8x8xf32> to vector<1x8xf32>
    %99 = vector.shape_cast %98 : vector<1x8xf32> to vector<1x8x1xf32>
    %100 = vector.broadcast %99 : vector<1x8x1xf32> to vector<1x8x8xf32>
    %101 = arith.subf %97, %100 : vector<1x8x8xf32>
    %102 = math.exp %101 : vector<1x8x8xf32>
    %cst_32 = arith.constant dense<0.000000e+00> : vector<1x8xf32>
    %103 = vector.multi_reduction <add>, %102, %cst_32 [2] : vector<1x8x8xf32> to vector<1x8xf32>
    %104 = vector.shape_cast %103 : vector<1x8xf32> to vector<1x8x1xf32>
    %105 = tpu.reciprocal %104 {approx = true} : vector<1x8x1xf32> -> vector<1x8x1xf32>
    %106 = vector.broadcast %105 : vector<1x8x1xf32> to vector<1x8x8xf32>
    %107 = arith.mulf %102, %106 : vector<1x8x8xf32>
    %108 = arith.truncf %107 : vector<1x8x8xf32> to vector<1x8x8xbf16>
    "tpu.trace_start"() <{level = 10 : i32, message = "bnm,bmd->bnd"}> : () -> ()
    %cst_33 = arith.constant dense<0.000000e+00> : vector<1x8x4xf32>
    %109 = tpu.matmul %108, %96, %cst_33 {dimension_numbers = #tpu.dot_dimension_numbers<[2], [1], [1], [2], [0, 0, 0, 1, 1, 2], [0], [0]>} : vector<1x8x8xbf16>, vector<1x8x4xbf16>, vector<1x8x4xf32> -> vector<1x8x4xf32>
    "tpu.trace_stop"() : () -> ()
    %110 = vector.extract_strided_slice %9 {offsets = [0, 0, 24], sizes = [1, 8, 4], strides = [1, 1, 1]} : vector<1x8x32xbf16> to vector<1x8x4xbf16>
    %111 = vector.extract_strided_slice %11 {offsets = [0, 0, 24], sizes = [1, 8, 4], strides = [1, 1, 1]} : vector<1x8x32xbf16> to vector<1x8x4xbf16>
    %112 = vector.extract_strided_slice %13 {offsets = [0, 0, 24], sizes = [1, 8, 4], strides = [1, 1, 1]} : vector<1x8x32xbf16> to vector<1x8x4xbf16>
    "tpu.trace_start"() <{level = 10 : i32, message = "bnd,bmd->bnm"}> : () -> ()
    %cst_34 = arith.constant dense<0.000000e+00> : vector<1x8x8xf32>
    %113 = tpu.matmul %110, %111, %cst_34 {dimension_numbers = #tpu.dot_dimension_numbers<[2], [2], [1], [1], [0, 0, 0, 1, 1, 1], [0], [0]>} : vector<1x8x4xbf16>, vector<1x8x4xbf16>, vector<1x8x8xf32> -> vector<1x8x8xf32>
    "tpu.trace_stop"() : () -> ()
    %cst_35 = arith.constant dense<0xFF800000> : vector<1x8xf32>
    %114 = vector.multi_reduction <maximumf>, %113, %cst_35 [2] : vector<1x8x8xf32> to vector<1x8xf32>
    %115 = vector.shape_cast %114 : vector<1x8xf32> to vector<1x8x1xf32>
    %116 = vector.broadcast %115 : vector<1x8x1xf32> to vector<1x8x8xf32>
    %117 = arith.subf %113, %116 : vector<1x8x8xf32>
    %118 = math.exp %117 : vector<1x8x8xf32>
    %cst_36 = arith.constant dense<0.000000e+00> : vector<1x8xf32>
    %119 = vector.multi_reduction <add>, %118, %cst_36 [2] : vector<1x8x8xf32> to vector<1x8xf32>
    %120 = vector.shape_cast %119 : vector<1x8xf32> to vector<1x8x1xf32>
    %121 = tpu.reciprocal %120 {approx = true} : vector<1x8x1xf32> -> vector<1x8x1xf32>
    %122 = vector.broadcast %121 : vector<1x8x1xf32> to vector<1x8x8xf32>
    %123 = arith.mulf %118, %122 : vector<1x8x8xf32>
    %124 = arith.truncf %123 : vector<1x8x8xf32> to vector<1x8x8xbf16>
    "tpu.trace_start"() <{level = 10 : i32, message = "bnm,bmd->bnd"}> : () -> ()
    %cst_37 = arith.constant dense<0.000000e+00> : vector<1x8x4xf32>
    %125 = tpu.matmul %124, %112, %cst_37 {dimension_numbers = #tpu.dot_dimension_numbers<[2], [1], [1], [2], [0, 0, 0, 1, 1, 2], [0], [0]>} : vector<1x8x8xbf16>, vector<1x8x4xbf16>, vector<1x8x4xf32> -> vector<1x8x4xf32>
    "tpu.trace_stop"() : () -> ()
    %126 = vector.extract_strided_slice %9 {offsets = [0, 0, 28], sizes = [1, 8, 4], strides = [1, 1, 1]} : vector<1x8x32xbf16> to vector<1x8x4xbf16>
    %127 = vector.extract_strided_slice %11 {offsets = [0, 0, 28], sizes = [1, 8, 4], strides = [1, 1, 1]} : vector<1x8x32xbf16> to vector<1x8x4xbf16>
    %128 = vector.extract_strided_slice %13 {offsets = [0, 0, 28], sizes = [1, 8, 4], strides = [1, 1, 1]} : vector<1x8x32xbf16> to vector<1x8x4xbf16>
    "tpu.trace_start"() <{level = 10 : i32, message = "bnd,bmd->bnm"}> : () -> ()
    %cst_38 = arith.constant dense<0.000000e+00> : vector<1x8x8xf32>
    %129 = tpu.matmul %126, %127, %cst_38 {dimension_numbers = #tpu.dot_dimension_numbers<[2], [2], [1], [1], [0, 0, 0, 1, 1, 1], [0], [0]>} : vector<1x8x4xbf16>, vector<1x8x4xbf16>, vector<1x8x8xf32> -> vector<1x8x8xf32>
    "tpu.trace_stop"() : () -> ()
    %cst_39 = arith.constant dense<0xFF800000> : vector<1x8xf32>
    %130 = vector.multi_reduction <maximumf>, %129, %cst_39 [2] : vector<1x8x8xf32> to vector<1x8xf32>
    %131 = vector.shape_cast %130 : vector<1x8xf32> to vector<1x8x1xf32>
    %132 = vector.broadcast %131 : vector<1x8x1xf32> to vector<1x8x8xf32>
    %133 = arith.subf %129, %132 : vector<1x8x8xf32>
    %134 = math.exp %133 : vector<1x8x8xf32>
    %cst_40 = arith.constant dense<0.000000e+00> : vector<1x8xf32>
    %135 = vector.multi_reduction <add>, %134, %cst_40 [2] : vector<1x8x8xf32> to vector<1x8xf32>
    %136 = vector.shape_cast %135 : vector<1x8xf32> to vector<1x8x1xf32>
    %137 = tpu.reciprocal %136 {approx = true} : vector<1x8x1xf32> -> vector<1x8x1xf32>
    %138 = vector.broadcast %137 : vector<1x8x1xf32> to vector<1x8x8xf32>
    %139 = arith.mulf %134, %138 : vector<1x8x8xf32>
    %140 = arith.truncf %139 : vector<1x8x8xf32> to vector<1x8x8xbf16>
    "tpu.trace_start"() <{level = 10 : i32, message = "bnm,bmd->bnd"}> : () -> ()
    %cst_41 = arith.constant dense<0.000000e+00> : vector<1x8x4xf32>
    %141 = tpu.matmul %140, %128, %cst_41 {dimension_numbers = #tpu.dot_dimension_numbers<[2], [1], [1], [2], [0, 0, 0, 1, 1, 2], [0], [0]>} : vector<1x8x8xbf16>, vector<1x8x4xbf16>, vector<1x8x4xf32> -> vector<1x8x4xf32>
    "tpu.trace_stop"() : () -> ()
    %142 = tpu.concatenate %29, %45, %61, %77, %93, %109, %125, %141 in 2 : vector<1x8x4xf32>, vector<1x8x4xf32>, vector<1x8x4xf32>, vector<1x8x4xf32>, vector<1x8x4xf32>, vector<1x8x4xf32>, vector<1x8x4xf32>, vector<1x8x4xf32> -> vector<1x8x32xf32>
    %143 = vector.shape_cast %142 : vector<1x8x32xf32> to vector<8x32xf32>
    %144 = arith.truncf %143 : vector<8x32xf32> to vector<8x32xbf16>
    %c0_42 = arith.constant 0 : index
    %c0_43 = arith.constant 0 : index
    %145 = vector.load %arg5[%c0_42, %c0_43] : memref<32x32xbf16, #tpu.memory_space<vmem>>, vector<32x32xbf16>
    %cst_44 = arith.constant dense<0.000000e+00> : vector<8x32xf32>
    %146 = tpu.matmul %144, %145, %cst_44 {dimension_numbers = #tpu.dot_dimension_numbers<[1], [0], [0], [1], [0, 0, 1, 1], [], []>} : vector<8x32xbf16>, vector<32x32xbf16>, vector<8x32xf32> -> vector<8x32xf32>
    %c0_45 = arith.constant 0 : index
    %c0_46 = arith.constant 0 : index
    %147 = vector.load %arg6[%c0_45, %c0_46] : memref<1x32xf32, #tpu.memory_space<vmem>>, vector<1x32xf32>
    %148 = vector.broadcast %147 : vector<1x32xf32> to vector<8x32xf32>
    %149 = arith.addf %146, %148 : vector<8x32xf32>
    %150 = vector.shape_cast %149 : vector<8x32xf32> to vector<1x8x32xf32>
    %c0_47 = arith.constant 0 : index
    %c0_48 = arith.constant 0 : index
    %c0_49 = arith.constant 0 : index
    %151 = vector.load %arg7[%c0_47, %c0_48, %c0_49] : memref<1x8x32xf32, #tpu.memory_space<vmem>>, vector<1x8x32xf32>
    tpu.vector_store %arg7[%c0_47, %c0_48, %c0_49], %150 {strides = array<i32>} : memref<1x8x32xf32, #tpu.memory_space<vmem>>, vector<1x8x32xf32>,
    return
  }
  func.func @transform_0(%arg0: i32) -> (i32, i32, i32) {
    %c0_i32 = arith.constant 0 : i32
    %c0_i32_0 = arith.constant 0 : i32
    %c0_i32_1 = arith.constant 0 : i32
    return %arg0, %c0_i32, %c0_i32_0 : i32, i32, i32
  }
  func.func @transform_1(%arg0: i32) -> (i32, i32) {
    %c0_i32 = arith.constant 0 : i32
    %c0_i32_0 = arith.constant 0 : i32
    %c0_i32_1 = arith.constant 0 : i32
    return %c0_i32, %c0_i32_0 : i32, i32
  }
  func.func @transform_2(%arg0: i32) -> (i32, i32) {
    %c0_i32 = arith.constant 0 : i32
    %c0_i32_0 = arith.constant 0 : i32
    %c0_i32_1 = arith.constant 0 : i32
    return %c0_i32, %c0_i32_0 : i32, i32
  }
  func.func @transform_3(%arg0: i32) -> (i32, i32) {
    %c0_i32 = arith.constant 0 : i32
    %c0_i32_0 = arith.constant 0 : i32
    %c0_i32_1 = arith.constant 0 : i32
    return %c0_i32, %c0_i32_0 : i32, i32
  }
  func.func @transform_4(%arg0: i32) -> (i32, i32) {
    %c0_i32 = arith.constant 0 : i32
    %c0_i32_0 = arith.constant 0 : i32
    %c0_i32_1 = arith.constant 0 : i32
    return %c0_i32, %c0_i32_0 : i32, i32
  }
  func.func @transform_5(%arg0: i32) -> (i32, i32) {
    %c0_i32 = arith.constant 0 : i32
    %c0_i32_0 = arith.constant 0 : i32
    %c0_i32_1 = arith.constant 0 : i32
    return %c0_i32, %c0_i32_0 : i32, i32
  }
  func.func @transform_6(%arg0: i32) -> (i32, i32, i32) {
    %c0_i32 = arith.constant 0 : i32
    %c0_i32_0 = arith.constant 0 : i32
    %c0_i32_1 = arith.constant 0 : i32
    return %arg0, %c0_i32, %c0_i32_0 : i32, i32, i32
  }
}

</mosaic_0001>

<llo_original>
// kernel: tpu_custom_call.1
$region0: #{tpu_custom_call.1}
  #allocation0 [shape = 'u32[]', space=smem, size = 0x4, offset = 0x4, fixed_abs, tag = 'smem constant byte address 0x4 - core index']
  #allocation1 [shape = 'u32[144,128]{1,0:T(1,128)}', space=vmem, size = 0x12000, scoped, tag = 'internal scratch']
  %s0 = inlined_call_operand.hbm [shape: bf16[2,8,32], index: 0, kind: input, shape index: {}]
  %s1 = inlined_call_operand.hbm [shape: bf16[32,32], index: 1, kind: input, shape index: {}]
  %s2 = inlined_call_operand.hbm [shape: bf16[32,32], index: 2, kind: input, shape index: {}]
  %s3 = inlined_call_operand.hbm [shape: bf16[32,32], index: 3, kind: input, shape index: {}]
  %s4 = inlined_call_operand.hbm [shape: bf16[32,32], index: 4, kind: input, shape index: {}]
  %s5 = inlined_call_operand.vmem [shape: f32[1,32], index: 5, kind: input, shape index: {}]
  %s6 = inlined_call_operand.hbm [shape: f32[2,8,32], index: 6, kind: output, shape index: {}]
  %s7 = sld [smem:[#allocation0]]
  $region77: #{tpu_custom_call.1} parent=0
    _
  %s9 = ssub.s32 1, %s7
  %s10 = scalar_select 0, %s9, %s7
  $region1: #{tpu_custom_call.1} parent=0
    #allocation2 [shape = 'u8[4096]{0}', space=vmem, size = 0x1000, scoped, tag = 'input window, operand 0']
    #allocation3 [shape = 's32[2]{0}', space=sflag, size = 0x8, scoped, tag = 'scoped memory for tpu_custom_call.1']
    #allocation4 [shape = 's32[2]{0}', space=sflag, size = 0x8, scoped, tag = 'scoped memory for tpu_custom_call.1']
    #allocation5 [shape = 'u8[8192]{0}', space=vmem, size = 0x2000, scoped, tag = 'input window, operand 1, single buffered']
    #allocation6 [shape = 's32[1]{0}', space=sflag, size = 0x4, scoped, tag = 'scoped memory for tpu_custom_call.1']
    #allocation7 [shape = 'u8[8192]{0}', space=vmem, size = 0x2000, scoped, tag = 'input window, operand 2, single buffered']
    #allocation8 [shape = 'u8[8192]{0}', space=vmem, size = 0x2000, scoped, tag = 'input window, operand 3, single buffered']
    #allocation9 [shape = 's32[1]{0}', space=sflag, size = 0x4, scoped, tag = 'scoped memory for tpu_custom_call.1']
    #allocation10 [shape = 'u8[8192]{0}', space=vmem, size = 0x2000, scoped, tag = 'input window, operand 4, single buffered']
    #allocation11 [shape = 'u8[8192]{0}', space=vmem, size = 0x2000, scoped, tag = 'output window, operand 0']
    %11 = vsyncpa [#allocation3], 0
    %s12 = scalar_lea.sflag [#allocation3], 1
    %13 = vsyncpa %s12, 0
    %14 = vsyncpa [#allocation6], 0
    %15 = vsyncpa [#allocation9], 0
    %16 = vsyncpa [#allocation4], 0
    %s17 = scalar_lea.sflag [#allocation4], 1
    %18 = vsyncpa %s17, 0
    loop: start=0, step=1, limit=4
    $region2: #{tpu_custom_call.1} parent=1 // loop_pre_header
      _
    $region3: #{tpu_custom_call.1} parent=1 // loop_header
      %s20 = sphi 0, %s24
      %p21 = scmp.ge.s32.totalorder %s20, 4
      %s30 = sphi 0, %s32
      %s33 = sphi 0, %s30
      %s34 = sphi 0, %s33
      %s50 = sphi 0, %s34
      %s54 = sphi 0, %s54
      %s56 = sphi 0, %s54
      %s57 = sphi 0, %s56
      %s71 = sphi 0, %s57
      %s75 = sphi 0, %s75
      %s77 = sphi 0, %s75
      %s78 = sphi 0, %s77
      %s92 = sphi 0, %s78
      %s96 = sphi 0, %s96
      %s98 = sphi 0, %s96
      %s99 = sphi 0, %s98
      %s113 = sphi 0, %s99
      %s117 = sphi 0, %s117
      %s119 = sphi 0, %s117
      %s120 = sphi 0, %s119
      %s134 = sphi 0, %s120
      %s138 = sphi 0, %s138
      %s140 = sphi 0, %s138
      %s141 = sphi 0, %s140
      %s155 = sphi 0, %s141
      %s161 = sphi 0, %s163
      %s164 = sphi 0, %s161
      %s165 = sphi 0, %s164
      %s181 = sphi 0, %s165
    $region4: #{tpu_custom_call.1} parent=1 // loop_header_branch
      %23 = sbr.rel (%p21) target = $region8
    $region5: #{tpu_custom_call.1} parent=1 // loop_body
      %s25 = ssub.s32 %s20, 1
      %s26 = ssub.s32 %s20, 2
      %s27 = sadd.s32 %s20, 1
      %s28 = ssub.s32 %s20, %s27
      %p29 = scmp.eq.s32.totalorder %s28, 0
      %s31 = sadd.s32 %s30, 1
      %s32 = scalar_select %p29, %s30, %s31
      %p35 = pneg %p29
      %p36 = scmp.eq.s32.totalorder %s20, 1
      %p37 = por %p35, %p36
      %p38 = scmp.ne.s32.totalorder %s30, %s33
      %p39 = scmp.eq.s32.totalorder %s20, 0
      %p40 = por %p38, %p39
      %p41 = scmp.ne.s32.totalorder %s30, %s33
      %p42 = scmp.eq.s32.totalorder %s25, 1
      %p43 = por %p41, %p42
      %p44 = scmp.ne.s32.totalorder %s33, %s34
      %p45 = scmp.eq.s32.totalorder %s25, 0
      %p46 = por %p44, %p45
      %p47 = scmp.ne.s32.totalorder %s33, %s34
      %p48 = scmp.eq.s32.totalorder %s26, 1
      %p49 = por %p47, %p48
      %p51 = scmp.ne.s32.totalorder %s34, %s50
      %p52 = scmp.eq.s32.totalorder %s26, 0
      %p53 = por %p51, %p52
      %s55 = sadd.s32 %s54, 1
      %p58 = scmp.eq.s32.totalorder %s20, 1
      %p59 = scmp.ne.s32.totalorder %s54, %s56
      %p60 = scmp.eq.s32.totalorder %s20, 0
      %p61 = por %p59, %p60
      %p62 = scmp.ne.s32.totalorder %s54, %s56
      %p63 = scmp.eq.s32.totalorder %s25, 1
      %p64 = por %p62, %p63
      %p65 = scmp.ne.s32.totalorder %s56, %s57
      %p66 = scmp.eq.s32.totalorder %s25, 0
      %p67 = por %p65, %p66
      %p68 = scmp.ne.s32.totalorder %s56, %s57
      %p69 = scmp.eq.s32.totalorder %s26, 1
      %p70 = por %p68, %p69
      %p72 = scmp.ne.s32.totalorder %s57, %s71
      %p73 = scmp.eq.s32.totalorder %s26, 0
      %p74 = por %p72, %p73
      %s76 = sadd.s32 %s75, 1
      %p79 = scmp.eq.s32.totalorder %s20, 1
      %p80 = scmp.ne.s32.totalorder %s75, %s77
      %p81 = scmp.eq.s32.totalorder %s20, 0
      %p82 = por %p80, %p81
      %p83 = scmp.ne.s32.totalorder %s75, %s77
      %p84 = scmp.eq.s32.totalorder %s25, 1
      %p85 = por %p83, %p84
      %p86 = scmp.ne.s32.totalorder %s77, %s78
      %p87 = scmp.eq.s32.totalorder %s25, 0
      %p88 = por %p86, %p87
      %p89 = scmp.ne.s32.totalorder %s77, %s78
      %p90 = scmp.eq.s32.totalorder %s26, 1
      %p91 = por %p89, %p90
      %p93 = scmp.ne.s32.totalorder %s78, %s92
      %p94 = scmp.eq.s32.totalorder %s26, 0
      %p95 = por %p93, %p94
      %s97 = sadd.s32 %s96, 1
      %p100 = scmp.eq.s32.totalorder %s20, 1
      %p101 = scmp.ne.s32.totalorder %s96, %s98
      %p102 = scmp.eq.s32.totalorder %s20, 0
      %p103 = por %p101, %p102
      %p104 = scmp.ne.s32.totalorder %s96, %s98
      %p105 = scmp.eq.s32.totalorder %s25, 1
      %p106 = por %p104, %p105
      %p107 = scmp.ne.s32.totalorder %s98, %s99
      %p108 = scmp.eq.s32.totalorder %s25, 0
      %p109 = por %p107, %p108
      %p110 = scmp.ne.s32.totalorder %s98, %s99
      %p111 = scmp.eq.s32.totalorder %s26, 1
      %p112 = por %p110, %p111
      %p114 = scmp.ne.s32.totalorder %s99, %s113
      %p115 = scmp.eq.s32.totalorder %s26, 0
      %p116 = por %p114, %p115
      %s118 = sadd.s32 %s117, 1
      %p121 = scmp.eq.s32.totalorder %s20, 1
      %p122 = scmp.ne.s32.totalorder %s117, %s119
      %p123 = scmp.eq.s32.totalorder %s20, 0
      %p124 = por %p122, %p123
      %p125 = scmp.ne.s32.totalorder %s117, %s119
      %p126 = scmp.eq.s32.totalorder %s25, 1
      %p127 = por %p125, %p126
      %p128 = scmp.ne.s32.totalorder %s119, %s120
      %p129 = scmp.eq.s32.totalorder %s25, 0
      %p130 = por %p128, %p129
      %p131 = scmp.ne.s32.totalorder %s119, %s120
      %p132 = scmp.eq.s32.totalorder %s26, 1
      %p133 = por %p131, %p132
      %p135 = scmp.ne.s32.totalorder %s120, %s134
      %p136 = scmp.eq.s32.totalorder %s26, 0
      %p137 = por %p135, %p136
      %s139 = sadd.s32 %s138, 1
      %p142 = scmp.eq.s32.totalorder %s20, 1
      %p143 = scmp.ne.s32.totalorder %s138, %s140
      %p144 = scmp.eq.s32.totalorder %s20, 0
      %p145 = por %p143, %p144
      %p146 = scmp.ne.s32.totalorder %s138, %s140
      %p147 = scmp.eq.s32.totalorder %s25, 1
      %p148 = por %p146, %p147
      %p149 = scmp.ne.s32.totalorder %s140, %s141
      %p150 = scmp.eq.s32.totalorder %s25, 0
      %p151 = por %p149, %p150
      %p152 = scmp.ne.s32.totalorder %s140, %s141
      %p153 = scmp.eq.s32.totalorder %s26, 1
      %p154 = por %p152, %p153
      %p156 = scmp.ne.s32.totalorder %s141, %s155
      %p157 = scmp.eq.s32.totalorder %s26, 0
      %p158 = por %p156, %p157
      %s159 = ssub.s32 %s20, %s27
      %p160 = scmp.eq.s32.totalorder %s159, 0
      %s162 = sadd.s32 %s161, 1
      %s163 = scalar_select %p160, %s161, %s162
      %p166 = pneg %p160
      %p167 = scmp.eq.s32.totalorder %s20, 1
      %p168 = por %p166, %p167
      %p169 = scmp.ne.s32.totalorder %s161, %s164
      %p170 = scmp.eq.s32.totalorder %s20, 0
      %p171 = por %p169, %p170
      %p172 = scmp.ne.s32.totalorder %s161, %s164
      %p173 = scmp.eq.s32.totalorder %s25, 1
      %p174 = por %p172, %p173
      %p175 = scmp.ne.s32.totalorder %s164, %s165
      %p176 = scmp.eq.s32.totalorder %s25, 0
      %p177 = por %p175, %p176
      %p178 = scmp.ne.s32.totalorder %s164, %s165
      %p179 = scmp.eq.s32.totalorder %s26, 1
      %p180 = por %p178, %p179
      %p182 = scmp.ne.s32.totalorder %s165, %s181
      %p183 = scmp.eq.s32.totalorder %s26, 0
      %p184 = por %p182, %p183
      %p185 = scmp.le.s32.totalorder 1, %s20
      %p186 = scmp.lt.s32.totalorder %s20, 3
      %p187 = pnand %p185, %p186
      %p188 = pneg %p187
      // Predicated region
      $region9: #{tpu_custom_call.1} parent=5 // pred_check
        _
      $region10: #{tpu_custom_call.1} parent=5 // pred_check_branch
        %190 = sbr.rel (%p187) target = $region12
      $region11: #{tpu_custom_call.1} parent=5 // pred_region
        %s191 = ssub.s32 %s20, 1
        // Predicated region
        $region13: #{tpu_custom_call.1} parent=11 // pred_check
          %p192 = pneg %p67
        $region14: #{tpu_custom_call.1} parent=11 // pred_check_branch
          %194 = sbr.rel (%p192) target = $region16
        $region15: #{tpu_custom_call.1} parent=11 // pred_region
          %s196 = ssub.s32 256, 256
          %197 = vsyncadd [#allocation6], %s196
          %s198 = sshll.u32 [#allocation5], 4
          %s199 = int_to_ptr.vmem [resolvable:$true] %s198
          %204 = dma.hbm_to_vmem [thread:$0]  %s1, 256, %s199, [#allocation6], 64, 64, 4
        $region16: #{tpu_custom_call.1} parent=11 // pred_fallthru
          _
        // Predicated region
        $region17: #{tpu_custom_call.1} parent=11 // pred_check
          %p205 = pneg %p88
        $region18: #{tpu_custom_call.1} parent=11 // pred_check_branch
          %207 = sbr.rel (%p205) target = $region20
        $region19: #{tpu_custom_call.1} parent=11 // pred_region
          %s209 = ssub.s32 256, 256
          %210 = vsyncadd [#allocation6], %s209
          %s211 = sshll.u32 [#allocation7], 4
          %s212 = int_to_ptr.vmem [resolvable:$true] %s211
          %217 = dma.hbm_to_vmem [thread:$0]  %s2, 256, %s212, [#allocation6], 64, 64, 4
        $region20: #{tpu_custom_call.1} parent=11 // pred_fallthru
          _
        // Predicated region
        $region21: #{tpu_custom_call.1} parent=11 // pred_check
          %p218 = pneg %p109
        $region22: #{tpu_custom_call.1} parent=11 // pred_check_branch
          %220 = sbr.rel (%p218) target = $region24
        $region23: #{tpu_custom_call.1} parent=11 // pred_region
          %s222 = ssub.s32 256, 256
          %223 = vsyncadd [#allocation9], %s222
          %s224 = sshll.u32 [#allocation8], 4
          %s225 = int_to_ptr.vmem [resolvable:$true] %s224
          %230 = dma.hbm_to_vmem [thread:$0]  %s3, 256, %s225, [#allocation9], 64, 64, 4
        $region24: #{tpu_custom_call.1} parent=11 // pred_fallthru
          _
        // Predicated region
        $region25: #{tpu_custom_call.1} parent=11 // pred_check
          %p231 = pneg %p130
        $region26: #{tpu_custom_call.1} parent=11 // pred_check_branch
          %233 = sbr.rel (%p231) target = $region28
        $region27: #{tpu_custom_call.1} parent=11 // pred_region
          %s235 = ssub.s32 256, 256
          %236 = vsyncadd [#allocation9], %s235
          %s237 = sshll.u32 [#allocation10], 4
          %s238 = int_to_ptr.vmem [resolvable:$true] %s237
          %243 = dma.hbm_to_vmem [thread:$0]  %s4, 256, %s238, [#allocation9], 64, 64, 4
        $region28: #{tpu_custom_call.1} parent=11 // pred_fallthru
          _
        // Predicated region
        $region29: #{tpu_custom_call.1} parent=11 // pred_check
          %p244 = pneg %p151
        $region30: #{tpu_custom_call.1} parent=11 // pred_check_branch
          %246 = sbr.rel (%p244) target = $region32
        $region31: #{tpu_custom_call.1} parent=11 // pred_region
          _
        $region32: #{tpu_custom_call.1} parent=11 // pred_fallthru
          _
      $region12: #{tpu_custom_call.1} parent=5 // pred_fallthru
        _
      %p247 = scmp.lt.s32.totalorder %s20, 2
      // Predicated region
      $region33: #{tpu_custom_call.1} parent=5 // pred_check
        %p248 = pneg %p247
      $region34: #{tpu_custom_call.1} parent=5 // pred_check_branch
        %250 = sbr.rel (%p248) target = $region36
      $region35: #{tpu_custom_call.1} parent=5 // pred_region
        // Predicated region
        $region37: #{tpu_custom_call.1} parent=35 // pred_check
          %p251 = pneg %p40
        $region38: #{tpu_custom_call.1} parent=35 // pred_check_branch
          %253 = sbr.rel (%p251) target = $region40
        $region39: #{tpu_custom_call.1} parent=35 // pred_region
          %s254 = sand.u32 %s30, 1
          %s255 = scalar_lea.sflag [#allocation3], %s254
          %s256 = sand.u32 %s30, 1
          %s257 = smul.addr %s256, 4
          %s258 = scalar_lea.vmem [#allocation2], %s257
          %s260 = ssub.s32 64, 64
          %261 = vsyncadd %s255, %s260
          %s262 = smul.addr %s20, 64
          %s263 = scalar_lea.hbm %s0, %s262
          %s265 = sshll.u32 %s258, 4
          %s266 = int_to_ptr.vmem [resolvable:$true] %s265
          %268 = dma.hbm_to_vmem [thread:$0]  %s263, 64, %s266, %s255
        $region40: #{tpu_custom_call.1} parent=35 // pred_fallthru
          _
      $region36: #{tpu_custom_call.1} parent=5 // pred_fallthru
        _
      %p269 = scmp.le.s32.totalorder 1, %s20
      %p270 = scmp.lt.s32.totalorder %s20, 3
      %p271 = pnand %p269, %p270
      %p272 = pneg %p271
      // Predicated region
      $region41: #{tpu_custom_call.1} parent=5 // pred_check
        _
      $region42: #{tpu_custom_call.1} parent=5 // pred_check_branch
        %274 = sbr.rel (%p271) target = $region44
      $region43: #{tpu_custom_call.1} parent=5 // pred_region
        %s275 = ssub.s32 %s20, 1
        %s276 = sand.u32 %s33, 1
        %s277 = scalar_lea.sflag [#allocation3], %s276
        %s278 = sand.u32 %s33, 1
        %s279 = smul.addr %s278, 4
        %s280 = scalar_lea.vmem [#allocation2], %s279
        // Predicated region
        $region45: #{tpu_custom_call.1} parent=43 // pred_check
          %p281 = pneg %p46
        $region46: #{tpu_custom_call.1} parent=43 // pred_check_branch
          %283 = sbr.rel (%p281) target = $region48
        $region47: #{tpu_custom_call.1} parent=43 // pred_region
          %284 = dma.done %s277, 64
        $region48: #{tpu_custom_call.1} parent=43 // pred_fallthru
          _
        // Predicated region
        $region49: #{tpu_custom_call.1} parent=43 // pred_check
          %p285 = pneg %p67
        $region50: #{tpu_custom_call.1} parent=43 // pred_check_branch
          %287 = sbr.rel (%p285) target = $region52
        $region51: #{tpu_custom_call.1} parent=43 // pred_region
          %288 = dma.done [#allocation6], 256
        $region52: #{tpu_custom_call.1} parent=43 // pred_fallthru
          _
        // Predicated region
        $region53: #{tpu_custom_call.1} parent=43 // pred_check
          %p289 = pneg %p88
        $region54: #{tpu_custom_call.1} parent=43 // pred_check_branch
          %291 = sbr.rel (%p289) target = $region56
        $region55: #{tpu_custom_call.1} parent=43 // pred_region
          %292 = dma.done [#allocation6], 256
        $region56: #{tpu_custom_call.1} parent=43 // pred_fallthru
          _
        // Predicated region
        $region57: #{tpu_custom_call.1} parent=43 // pred_check
          %p293 = pneg %p109
        $region58: #{tpu_custom_call.1} parent=43 // pred_check_branch
          %295 = sbr.rel (%p293) target = $region60
        $region59: #{tpu_custom_call.1} parent=43 // pred_region
          %296 = dma.done [#allocation9], 256
        $region60: #{tpu_custom_call.1} parent=43 // pred_fallthru
          _
        // Predicated region
        $region61: #{tpu_custom_call.1} parent=43 // pred_check
          %p297 = pneg %p130
        $region62: #{tpu_custom_call.1} parent=43 // pred_check_branch
          %299 = sbr.rel (%p297) target = $region64
        $region63: #{tpu_custom_call.1} parent=43 // pred_region
          %300 = dma.done [#allocation9], 256
        $region64: #{tpu_custom_call.1} parent=43 // pred_fallthru
          _
        %s301 = sand.u32 %s33, 1
        %s302 = scalar_lea.sflag [#allocation3], %s301
        %s303 = sand.u32 %s33, 1
        %s304 = smul.addr %s303, 4
        %s305 = scalar_lea.vmem [#allocation2], %s304
        %p306 = pneg %p46
        %p307 = pneg %p43
        %p308 = pneg %p67
        %p309 = pneg %p64
        %p310 = pneg %p88
        %p311 = pneg %p85
        %p312 = pneg %p109
        %p313 = pneg %p106
        %p314 = pneg %p130
        %p315 = pneg %p127
        %p316 = pneg %p151
        %p317 = pneg %p148
        %p318 = pneg %p177
        %p319 = pneg %p174
        %s320 = sand.u32 %s164, 1
        %s321 = scalar_lea.sflag [#allocation4], %s320
        %s322 = sand.u32 %s164, 1
        %s323 = smul.addr %s322, 8
        %s324 = scalar_lea.vmem [#allocation11], %s323
        %v326 = vld [vmem:[%s280] sm:$0xf]
        %v327 = vld [vmem:[#allocation5] sm:$0xf]
        %v328 = vld [vmem:[#allocation5 + $0x4] sm:$0xf]
        %v329 = vld [vmem:[#allocation5 + $0x8] sm:$0xf]
        %v330 = vld [vmem:[#allocation5 + $0xc] sm:$0xf]
        %v335 = vunpack.c.l.b16 %v327
        %v336 = vunpack.c.l.b16 %v328
        %v337 = vunpack.c.l.b16 %v329
        %v338 = vunpack.c.l.b16 %v330
        %v339 = vpack.c.b16 %v336, %v335
        %v340 = vpack.c.b16 %v338, %v337
        %vm343 = vcmask 261120
        %v345 = vsel %vm343, %v326, 0
        %347 = vmatprep.subr.bf16.mxu0 0
        %348 = vmatpush1.bf16.msra.mxu0 0
        %349 = vmatprep.subr.bf16.mxu0 0
        %350 = vmatpush1.bf16.msra.mxu0 0
        %351 = vmatprep.subr.bf16.mxu0 0
        %352 = vmatpush1.bf16.msra.mxu0 0
        %353 = vmatprep.subr.bf16.mxu0 0
        %354 = vmatpush1.bf16.msra.mxu0 0
        %355 = vmatprep.subr.bf16.mxu0 0
        %356 = vmatpush1.bf16.msra.mxu0 0
        %357 = vmatprep.subr.bf16.mxu0 0
        %358 = vmatpush1.bf16.msra.mxu0 0
        %359 = vmatprep.subr.bf16.mxu0 0
        %360 = vmatpush1.bf16.msra.mxu0 %v340
        %361 = vmatprep.subr.bf16.mxu0 0
        %362 = vmatpush1.bf16.msra.mxu0 %v339
        %363 = vmatprep.subr.bf16.mxu0 0
        %364 = vmatpush2.bf16.msra.mxu0 0
        %365 = vmatprep.subr.bf16.mxu0 0
        %366 = vmatpush2.bf16.msra.mxu0 0
        %367 = vmatprep.subr.bf16.mxu0 0
        %368 = vmatpush2.bf16.msra.mxu0 0
        %369 = vmatprep.subr.bf16.mxu0 0
        %370 = vmatpush2.bf16.msra.mxu0 0
        %371 = vmatprep.subr.bf16.mxu0 0
        %372 = vmatpush2.bf16.msra.mxu0 0
        %373 = vmatprep.subr.bf16.mxu0 0
        %374 = vmatpush2.bf16.msra.mxu0 0
        %375 = vmatprep.subr.bf16.mxu0 0
        %376 = vmatpush2.bf16.msra.mxu0 0
        %377 = vmatprep.subr.bf16.mxu0 0
        %378 = vmatpush2.bf16.msra.mxu0 0
        %379 = vmatprep.mubr.bf16.mxu0 0
        %380 = vmatmul.mubr.bf16.gmra.mxu0 %v345
        %v381 = vpop.f32.mrf.mxu0
        %v382 = vadd.f32 0.0, %v381
        %v383 = vpop.f32.mrf.mxu0
        %v384 = vpop.f32.mrf.mxu0
        %v385 = vpop.f32.mrf.mxu0
        %386 = vdwg.mxu0
        %v387 = vld [vmem:[#allocation7] sm:$0xf]
        %v388 = vld [vmem:[#allocation7 + $0x4] sm:$0xf]
        %v389 = vld [vmem:[#allocation7 + $0x8] sm:$0xf]
        %v390 = vld [vmem:[#allocation7 + $0xc] sm:$0xf]
        %v395 = vunpack.c.l.b16 %v387
        %v396 = vunpack.c.l.b16 %v388
        %v397 = vunpack.c.l.b16 %v389
        %v398 = vunpack.c.l.b16 %v390
        %v399 = vpack.c.b16 %v396, %v395
        %v400 = vpack.c.b16 %v398, %v397
        %403 = vmatprep.subr.bf16.mxu0 0
        %404 = vmatpush1.bf16.msra.mxu0 0
        %405 = vmatprep.subr.bf16.mxu0 0
        %406 = vmatpush1.bf16.msra.mxu0 0
        %407 = vmatprep.subr.bf16.mxu0 0
        %408 = vmatpush1.bf16.msra.mxu0 0
        %409 = vmatprep.subr.bf16.mxu0 0
        %410 = vmatpush1.bf16.msra.mxu0 0
        %411 = vmatprep.subr.bf16.mxu0 0
        %412 = vmatpush1.bf16.msra.mxu0 0
        %413 = vmatprep.subr.bf16.mxu0 0
        %414 = vmatpush1.bf16.msra.mxu0 0
        %415 = vmatprep.subr.bf16.mxu0 0
        %416 = vmatpush1.bf16.msra.mxu0 %v400
        %417 = vmatprep.subr.bf16.mxu0 0
        %418 = vmatpush1.bf16.msra.mxu0 %v399
        %419 = vmatprep.subr.bf16.mxu0 0
        %420 = vmatpush2.bf16.msra.mxu0 0
        %421 = vmatprep.subr.bf16.mxu0 0
        %422 = vmatpush2.bf16.msra.mxu0 0
        %423 = vmatprep.subr.bf16.mxu0 0
        %424 = vmatpush2.bf16.msra.mxu0 0
        %425 = vmatprep.subr.bf16.mxu0 0
        %426 = vmatpush2.bf16.msra.mxu0 0
        %427 = vmatprep.subr.bf16.mxu0 0
        %428 = vmatpush2.bf16.msra.mxu0 0
        %429 = vmatprep.subr.bf16.mxu0 0
        %430 = vmatpush2.bf16.msra.mxu0 0
        %431 = vmatprep.subr.bf16.mxu0 0
        %432 = vmatpush2.bf16.msra.mxu0 0
        %433 = vmatprep.subr.bf16.mxu0 0
        %434 = vmatpush2.bf16.msra.mxu0 0
        %435 = vmatprep.mubr.bf16.mxu0 0
        %436 = vmatmul.mubr.bf16.gmra.mxu0 %v345
        %v437 = vpop.f32.mrf.mxu0
        %v438 = vadd.f32 0.0, %v437
        %v439 = vpop.f32.mrf.mxu0
        %v440 = vpop.f32.mrf.mxu0
        %v441 = vpop.f32.mrf.mxu0
        %442 = vdwg.mxu0
        %v443 = vld [vmem:[#allocation8] sm:$0xf]
        %v444 = vld [vmem:[#allocation8 + $0x4] sm:$0xf]
        %v445 = vld [vmem:[#allocation8 + $0x8] sm:$0xf]
        %v446 = vld [vmem:[#allocation8 + $0xc] sm:$0xf]
        %v451 = vunpack.c.l.b16 %v443
        %v452 = vunpack.c.l.b16 %v444
        %v453 = vunpack.c.l.b16 %v445
        %v454 = vunpack.c.l.b16 %v446
        %v455 = vpack.c.b16 %v452, %v451
        %v456 = vpack.c.b16 %v454, %v453
        %459 = vmatprep.subr.bf16.mxu0 0
        %460 = vmatpush1.bf16.msra.mxu0 0
        %461 = vmatprep.subr.bf16.mxu0 0
        %462 = vmatpush1.bf16.msra.mxu0 0
        %463 = vmatprep.subr.bf16.mxu0 0
        %464 = vmatpush1.bf16.msra.mxu0 0
        %465 = vmatprep.subr.bf16.mxu0 0
        %466 = vmatpush1.bf16.msra.mxu0 0
        %467 = vmatprep.subr.bf16.mxu0 0
        %468 = vmatpush1.bf16.msra.mxu0 0
        %469 = vmatprep.subr.bf16.mxu0 0
        %470 = vmatpush1.bf16.msra.mxu0 0
        %471 = vmatprep.subr.bf16.mxu0 0
        %472 = vmatpush1.bf16.msra.mxu0 %v456
        %473 = vmatprep.subr.bf16.mxu0 0
        %474 = vmatpush1.bf16.msra.mxu0 %v455
        %475 = vmatprep.subr.bf16.mxu0 0
        %476 = vmatpush2.bf16.msra.mxu0 0
        %477 = vmatprep.subr.bf16.mxu0 0
        %478 = vmatpush2.bf16.msra.mxu0 0
        %479 = vmatprep.subr.bf16.mxu0 0
        %480 = vmatpush2.bf16.msra.mxu0 0
        %481 = vmatprep.subr.bf16.mxu0 0
        %482 = vmatpush2.bf16.msra.mxu0 0
        %483 = vmatprep.subr.bf16.mxu0 0
        %484 = vmatpush2.bf16.msra.mxu0 0
        %485 = vmatprep.subr.bf16.mxu0 0
        %486 = vmatpush2.bf16.msra.mxu0 0
        %487 = vmatprep.subr.bf16.mxu0 0
        %488 = vmatpush2.bf16.msra.mxu0 0
        %489 = vmatprep.subr.bf16.mxu0 0
        %490 = vmatpush2.bf16.msra.mxu0 0
        %491 = vmatprep.mubr.bf16.mxu0 0
        %492 = vmatmul.mubr.bf16.gmra.mxu0 %v345
        %v493 = vpop.f32.mrf.mxu0
        %v494 = vadd.f32 0.0, %v493
        %v495 = vpop.f32.mrf.mxu0
        %v496 = vpop.f32.mrf.mxu0
        %v497 = vpop.f32.mrf.mxu0
        %498 = vdwg.mxu0
        %v499 = vpack.c.bf16 %v382, %v382
        %v500 = vpack.c.bf16 %v438, %v438
        %v501 = vpack.c.bf16 %v494, %v494
        %vm502 = vcmask 31744
        %v504 = vsel %vm502, %v499, 0
        %v507 = vsel %vm502, %v500, 0
        %509 = vmatprep.subr.bf16.mxu0 0
        %510 = vmatpush1.bf16.xpose.msra.mxu0 0
        %511 = vmatprep.subr.bf16.mxu0 0
        %512 = vmatpush1.bf16.xpose.msra.mxu0 0
        %513 = vmatprep.subr.bf16.mxu0 0
        %514 = vmatpush1.bf16.xpose.msra.mxu0 0
        %515 = vmatprep.subr.bf16.mxu0 0
        %516 = vmatpush1.bf16.xpose.msra.mxu0 0
        %517 = vmatprep.subr.bf16.mxu0 0
        %518 = vmatpush1.bf16.xpose.msra.mxu0 0
        %519 = vmatprep.subr.bf16.mxu0 0
        %520 = vmatpush1.bf16.xpose.msra.mxu0 0
        %521 = vmatprep.subr.bf16.mxu0 0
        %522 = vmatpush1.bf16.xpose.msra.mxu0 0
        %523 = vmatprep.subr.bf16.mxu0 0
        %524 = vmatpush1.bf16.xpose.msra.mxu0 %v507
        %525 = vmatprep.subr.bf16.mxu0 0
        %526 = vmatpush2.bf16.xpose.msra.mxu0 0
        %527 = vmatprep.subr.bf16.mxu0 0
        %528 = vmatpush2.bf16.xpose.msra.mxu0 0
        %529 = vmatprep.subr.bf16.mxu0 0
        %530 = vmatpush2.bf16.xpose.msra.mxu0 0
        %531 = vmatprep.subr.bf16.mxu0 0
        %532 = vmatpush2.bf16.xpose.msra.mxu0 0
        %533 = vmatprep.subr.bf16.mxu0 0
        %534 = vmatpush2.bf16.xpose.msra.mxu0 0
        %535 = vmatprep.subr.bf16.mxu0 0
        %536 = vmatpush2.bf16.xpose.msra.mxu0 0
        %537 = vmatprep.subr.bf16.mxu0 0
        %538 = vmatpush2.bf16.xpose.msra.mxu0 0
        %539 = vmatprep.subr.bf16.mxu0 0
        %540 = vmatpush2.bf16.xpose.msra.mxu0 0
        %541 = vmatprep.mubr.bf16.mxu0 0
        %542 = vmatmul.mubr.bf16.gmra.mxu0 %v504
        %v543 = vpop.f32.mrf.mxu0
        %v544 = vadd.f32 0.0, %v543
        %v545 = vpop.f32.mrf.mxu0
        %v546 = vpop.f32.mrf.mxu0
        %v547 = vpop.f32.mrf.mxu0
        %548 = vdwg.mxu0
        %vm549 = vcmask 64512
        %v550 = vsel %vm549, %v544, -inf
        %551 = vmax.xlane.f32.xlu0 %v550
        %v552 = vpop.xlane.xlu0 %551
        %v553 = vsub.f32 %v544, %v552
        %v554 = vmul.f32 %v553, 1.442695
        %v555 = vpow.pop %v554
        %v556 = vsel %vm549, %v555, 0.0
        %557 = vadd.xlane.f32.xlu0 %v556
        %v558 = vpop.xlane.xlu0 %557
        %v559 = vrcp.pop %v558
        %v560 = vmul.f32 %v555, %v559
        %v561 = vpack.c.bf16 %v560, %v560
        %v563 = vsel %vm549, %v561, 0
        %vm565 = vcmask 1043456
        %v567 = vsel %vm565, %v501, 0
        %569 = vmatprep.subr.bf16.mxu0 0
        %570 = vmatpush1.bf16.msra.mxu0 0
        %571 = vmatprep.subr.bf16.mxu0 0
        %572 = vmatpush1.bf16.msra.mxu0 0
        %573 = vmatprep.subr.bf16.mxu0 0
        %574 = vmatpush1.bf16.msra.mxu0 0
        %575 = vmatprep.subr.bf16.mxu0 0
        %576 = vmatpush1.bf16.msra.mxu0 0
        %577 = vmatprep.subr.bf16.mxu0 0
        %578 = vmatpush1.bf16.msra.mxu0 0
        %579 = vmatprep.subr.bf16.mxu0 0
        %580 = vmatpush1.bf16.msra.mxu0 0
        %581 = vmatprep.subr.bf16.mxu0 0
        %582 = vmatpush1.bf16.msra.mxu0 0
        %583 = vmatprep.subr.bf16.mxu0 0
        %584 = vmatpush1.bf16.msra.mxu0 %v567
        %585 = vmatprep.subr.bf16.mxu0 0
        %586 = vmatpush2.bf16.msra.mxu0 0
        %587 = vmatprep.subr.bf16.mxu0 0
        %588 = vmatpush2.bf16.msra.mxu0 0
        %589 = vmatprep.subr.bf16.mxu0 0
        %590 = vmatpush2.bf16.msra.mxu0 0
        %591 = vmatprep.subr.bf16.mxu0 0
        %592 = vmatpush2.bf16.msra.mxu0 0
        %593 = vmatprep.subr.bf16.mxu0 0
        %594 = vmatpush2.bf16.msra.mxu0 0
        %595 = vmatprep.subr.bf16.mxu0 0
        %596 = vmatpush2.bf16.msra.mxu0 0
        %597 = vmatprep.subr.bf16.mxu0 0
        %598 = vmatpush2.bf16.msra.mxu0 0
        %599 = vmatprep.subr.bf16.mxu0 0
        %600 = vmatpush2.bf16.msra.mxu0 0
        %601 = vmatprep.mubr.bf16.mxu0 0
        %602 = vmatmul.mubr.bf16.gmra.mxu0 %v563
        %v603 = vpop.f32.mrf.mxu0
        %v604 = vadd.f32 0.0, %v603
        %v605 = vpop.f32.mrf.mxu0
        %v606 = vpop.f32.mrf.mxu0
        %v607 = vpop.f32.mrf.mxu0
        %608 = vdwg.mxu0
        %610 = vrot.lane.b32.xlu0 %v499, 124
        %v611 = vpop.permute.xlu0 %610
        %613 = vrot.lane.b32.xlu0 %v500, 124
        %v614 = vpop.permute.xlu0 %613
        %v616 = vsel %vm502, %v611, 0
        %v619 = vsel %vm502, %v614, 0
        %621 = vmatprep.subr.bf16.mxu0 0
        %622 = vmatpush1.bf16.xpose.msra.mxu0 0
        %623 = vmatprep.subr.bf16.mxu0 0
        %624 = vmatpush1.bf16.xpose.msra.mxu0 0
        %625 = vmatprep.subr.bf16.mxu0 0
        %626 = vmatpush1.bf16.xpose.msra.mxu0 0
        %627 = vmatprep.subr.bf16.mxu0 0
        %628 = vmatpush1.bf16.xpose.msra.mxu0 0
        %629 = vmatprep.subr.bf16.mxu0 0
        %630 = vmatpush1.bf16.xpose.msra.mxu0 0
        %631 = vmatprep.subr.bf16.mxu0 0
        %632 = vmatpush1.bf16.xpose.msra.mxu0 0
        %633 = vmatprep.subr.bf16.mxu0 0
        %634 = vmatpush1.bf16.xpose.msra.mxu0 0
        %635 = vmatprep.subr.bf16.mxu0 0
        %636 = vmatpush1.bf16.xpose.msra.mxu0 %v619
        %637 = vmatprep.subr.bf16.mxu0 0
        %638 = vmatpush2.bf16.xpose.msra.mxu0 0
        %639 = vmatprep.subr.bf16.mxu0 0
        %640 = vmatpush2.bf16.xpose.msra.mxu0 0
        %641 = vmatprep.subr.bf16.mxu0 0
        %642 = vmatpush2.bf16.xpose.msra.mxu0 0
        %643 = vmatprep.subr.bf16.mxu0 0
        %644 = vmatpush2.bf16.xpose.msra.mxu0 0
        %645 = vmatprep.subr.bf16.mxu0 0
        %646 = vmatpush2.bf16.xpose.msra.mxu0 0
        %647 = vmatprep.subr.bf16.mxu0 0
        %648 = vmatpush2.bf16.xpose.msra.mxu0 0
        %649 = vmatprep.subr.bf16.mxu0 0
        %650 = vmatpush2.bf16.xpose.msra.mxu0 0
        %651 = vmatprep.subr.bf16.mxu0 0
        %652 = vmatpush2.bf16.xpose.msra.mxu0 0
        %653 = vmatprep.mubr.bf16.mxu0 0
        %654 = vmatmul.mubr.bf16.gmra.mxu0 %v616
        %v655 = vpop.f32.mrf.mxu0
        %v656 = vadd.f32 0.0, %v655
        %v657 = vpop.f32.mrf.mxu0
        %v658 = vpop.f32.mrf.mxu0
        %v659 = vpop.f32.mrf.mxu0
        %660 = vdwg.mxu0
        %v661 = vsel %vm549, %v656, -inf
        %662 = vmax.xlane.f32.xlu0 %v661
        %v663 = vpop.xlane.xlu0 %662
        %v664 = vsub.f32 %v656, %v663
        %v665 = vmul.f32 %v664, 1.442695
        %v666 = vpow.pop %v665
        %v667 = vsel %vm549, %v666, 0.0
        %668 = vadd.xlane.f32.xlu0 %v667
        %v669 = vpop.xlane.xlu0 %668
        %v670 = vrcp.pop %v669
        %v671 = vmul.f32 %v666, %v670
        %v672 = vpack.c.bf16 %v671, %v671
        %674 = vrot.lane.b32.xlu0 %v501, 124
        %v675 = vpop.permute.xlu0 %674
        %v677 = vsel %vm549, %v672, 0
        %v680 = vsel %vm565, %v675, 0
        %682 = vmatprep.subr.bf16.mxu0 0
        %683 = vmatpush1.bf16.msra.mxu0 0
        %684 = vmatprep.subr.bf16.mxu0 0
        %685 = vmatpush1.bf16.msra.mxu0 0
        %686 = vmatprep.subr.bf16.mxu0 0
        %687 = vmatpush1.bf16.msra.mxu0 0
        %688 = vmatprep.subr.bf16.mxu0 0
        %689 = vmatpush1.bf16.msra.mxu0 0
        %690 = vmatprep.subr.bf16.mxu0 0
        %691 = vmatpush1.bf16.msra.mxu0 0
        %692 = vmatprep.subr.bf16.mxu0 0
        %693 = vmatpush1.bf16.msra.mxu0 0
        %694 = vmatprep.subr.bf16.mxu0 0
        %695 = vmatpush1.bf16.msra.mxu0 0
        %696 = vmatprep.subr.bf16.mxu0 0
        %697 = vmatpush1.bf16.msra.mxu0 %v680
        %698 = vmatprep.subr.bf16.mxu0 0
        %699 = vmatpush2.bf16.msra.mxu0 0
        %700 = vmatprep.subr.bf16.mxu0 0
        %701 = vmatpush2.bf16.msra.mxu0 0
        %702 = vmatprep.subr.bf16.mxu0 0
        %703 = vmatpush2.bf16.msra.mxu0 0
        %704 = vmatprep.subr.bf16.mxu0 0
        %705 = vmatpush2.bf16.msra.mxu0 0
        %706 = vmatprep.subr.bf16.mxu0 0
        %707 = vmatpush2.bf16.msra.mxu0 0
        %708 = vmatprep.subr.bf16.mxu0 0
        %709 = vmatpush2.bf16.msra.mxu0 0
        %710 = vmatprep.subr.bf16.mxu0 0
        %711 = vmatpush2.bf16.msra.mxu0 0
        %712 = vmatprep.subr.bf16.mxu0 0
        %713 = vmatpush2.bf16.msra.mxu0 0
        %714 = vmatprep.mubr.bf16.mxu0 0
        %715 = vmatmul.mubr.bf16.gmra.mxu0 %v677
        %v716 = vpop.f32.mrf.mxu0
        %v717 = vadd.f32 0.0, %v716
        %v718 = vpop.f32.mrf.mxu0
        %v719 = vpop.f32.mrf.mxu0
        %v720 = vpop.f32.mrf.mxu0
        %721 = vdwg.mxu0
        %722 = vrot.lane.b32.xlu0 %v499, 120
        %v723 = vpop.permute.xlu0 %722
        %724 = vrot.lane.b32.xlu0 %v500, 120
        %v725 = vpop.permute.xlu0 %724
        %v727 = vsel %vm502, %v723, 0
        %v730 = vsel %vm502, %v725, 0
        %732 = vmatprep.subr.bf16.mxu0 0
        %733 = vmatpush1.bf16.xpose.msra.mxu0 0
        %734 = vmatprep.subr.bf16.mxu0 0
        %735 = vmatpush1.bf16.xpose.msra.mxu0 0
        %736 = vmatprep.subr.bf16.mxu0 0
        %737 = vmatpush1.bf16.xpose.msra.mxu0 0
        %738 = vmatprep.subr.bf16.mxu0 0
        %739 = vmatpush1.bf16.xpose.msra.mxu0 0
        %740 = vmatprep.subr.bf16.mxu0 0
        %741 = vmatpush1.bf16.xpose.msra.mxu0 0
        %742 = vmatprep.subr.bf16.mxu0 0
        %743 = vmatpush1.bf16.xpose.msra.mxu0 0
        %744 = vmatprep.subr.bf16.mxu0 0
        %745 = vmatpush1.bf16.xpose.msra.mxu0 0
        %746 = vmatprep.subr.bf16.mxu0 0
        %747 = vmatpush1.bf16.xpose.msra.mxu0 %v730
        %748 = vmatprep.subr.bf16.mxu0 0
        %749 = vmatpush2.bf16.xpose.msra.mxu0 0
        %750 = vmatprep.subr.bf16.mxu0 0
        %751 = vmatpush2.bf16.xpose.msra.mxu0 0
        %752 = vmatprep.subr.bf16.mxu0 0
        %753 = vmatpush2.bf16.xpose.msra.mxu0 0
        %754 = vmatprep.subr.bf16.mxu0 0
        %755 = vmatpush2.bf16.xpose.msra.mxu0 0
        %756 = vmatprep.subr.bf16.mxu0 0
        %757 = vmatpush2.bf16.xpose.msra.mxu0 0
        %758 = vmatprep.subr.bf16.mxu0 0
        %759 = vmatpush2.bf16.xpose.msra.mxu0 0
        %760 = vmatprep.subr.bf16.mxu0 0
        %761 = vmatpush2.bf16.xpose.msra.mxu0 0
        %762 = vmatprep.subr.bf16.mxu0 0
        %763 = vmatpush2.bf16.xpose.msra.mxu0 0
        %764 = vmatprep.mubr.bf16.mxu0 0
        %765 = vmatmul.mubr.bf16.gmra.mxu0 %v727
        %v766 = vpop.f32.mrf.mxu0
        %v767 = vadd.f32 0.0, %v766
        %v768 = vpop.f32.mrf.mxu0
        %v769 = vpop.f32.mrf.mxu0
        %v770 = vpop.f32.mrf.mxu0
        %771 = vdwg.mxu0
        %v772 = vsel %vm549, %v767, -inf
        %773 = vmax.xlane.f32.xlu0 %v772
        %v774 = vpop.xlane.xlu0 %773
        %v775 = vsub.f32 %v767, %v774
        %v776 = vmul.f32 %v775, 1.442695
        %v777 = vpow.pop %v776
        %v778 = vsel %vm549, %v777, 0.0
        %779 = vadd.xlane.f32.xlu0 %v778
        %v780 = vpop.xlane.xlu0 %779
        %v781 = vrcp.pop %v780
        %v782 = vmul.f32 %v777, %v781
        %v783 = vpack.c.bf16 %v782, %v782
        %784 = vrot.lane.b32.xlu0 %v501, 120
        %v785 = vpop.permute.xlu0 %784
        %v787 = vsel %vm549, %v783, 0
        %v790 = vsel %vm565, %v785, 0
        %792 = vmatprep.subr.bf16.mxu0 0
        %793 = vmatpush1.bf16.msra.mxu0 0
        %794 = vmatprep.subr.bf16.mxu0 0
        %795 = vmatpush1.bf16.msra.mxu0 0
        %796 = vmatprep.subr.bf16.mxu0 0
        %797 = vmatpush1.bf16.msra.mxu0 0
        %798 = vmatprep.subr.bf16.mxu0 0
        %799 = vmatpush1.bf16.msra.mxu0 0
        %800 = vmatprep.subr.bf16.mxu0 0
        %801 = vmatpush1.bf16.msra.mxu0 0
        %802 = vmatprep.subr.bf16.mxu0 0
        %803 = vmatpush1.bf16.msra.mxu0 0
        %804 = vmatprep.subr.bf16.mxu0 0
        %805 = vmatpush1.bf16.msra.mxu0 0
        %806 = vmatprep.subr.bf16.mxu0 0
        %807 = vmatpush1.bf16.msra.mxu0 %v790
        %808 = vmatprep.subr.bf16.mxu0 0
        %809 = vmatpush2.bf16.msra.mxu0 0
        %810 = vmatprep.subr.bf16.mxu0 0
        %811 = vmatpush2.bf16.msra.mxu0 0
        %812 = vmatprep.subr.bf16.mxu0 0
        %813 = vmatpush2.bf16.msra.mxu0 0
        %814 = vmatprep.subr.bf16.mxu0 0
        %815 = vmatpush2.bf16.msra.mxu0 0
        %816 = vmatprep.subr.bf16.mxu0 0
        %817 = vmatpush2.bf16.msra.mxu0 0
        %818 = vmatprep.subr.bf16.mxu0 0
        %819 = vmatpush2.bf16.msra.mxu0 0
        %820 = vmatprep.subr.bf16.mxu0 0
        %821 = vmatpush2.bf16.msra.mxu0 0
        %822 = vmatprep.subr.bf16.mxu0 0
        %823 = vmatpush2.bf16.msra.mxu0 0
        %824 = vmatprep.mubr.bf16.mxu0 0
        %825 = vmatmul.mubr.bf16.gmra.mxu0 %v787
        %v826 = vpop.f32.mrf.mxu0
        %v827 = vadd.f32 0.0, %v826
        %v828 = vpop.f32.mrf.mxu0
        %v829 = vpop.f32.mrf.mxu0
        %v830 = vpop.f32.mrf.mxu0
        %831 = vdwg.mxu0
        %832 = vrot.lane.b32.xlu0 %v499, 116
        %v833 = vpop.permute.xlu0 %832
        %834 = vrot.lane.b32.xlu0 %v500, 116
        %v835 = vpop.permute.xlu0 %834
        %v837 = vsel %vm502, %v833, 0
        %v840 = vsel %vm502, %v835, 0
        %842 = vmatprep.subr.bf16.mxu0 0
        %843 = vmatpush1.bf16.xpose.msra.mxu0 0
        %844 = vmatprep.subr.bf16.mxu0 0
        %845 = vmatpush1.bf16.xpose.msra.mxu0 0
        %846 = vmatprep.subr.bf16.mxu0 0
        %847 = vmatpush1.bf16.xpose.msra.mxu0 0
        %848 = vmatprep.subr.bf16.mxu0 0
        %849 = vmatpush1.bf16.xpose.msra.mxu0 0
        %850 = vmatprep.subr.bf16.mxu0 0
        %851 = vmatpush1.bf16.xpose.msra.mxu0 0
        %852 = vmatprep.subr.bf16.mxu0 0
        %853 = vmatpush1.bf16.xpose.msra.mxu0 0
        %854 = vmatprep.subr.bf16.mxu0 0
        %855 = vmatpush1.bf16.xpose.msra.mxu0 0
        %856 = vmatprep.subr.bf16.mxu0 0
        %857 = vmatpush1.bf16.xpose.msra.mxu0 %v840
        %858 = vmatprep.subr.bf16.mxu0 0
        %859 = vmatpush2.bf16.xpose.msra.mxu0 0
        %860 = vmatprep.subr.bf16.mxu0 0
        %861 = vmatpush2.bf16.xpose.msra.mxu0 0
        %862 = vmatprep.subr.bf16.mxu0 0
        %863 = vmatpush2.bf16.xpose.msra.mxu0 0
        %864 = vmatprep.subr.bf16.mxu0 0
        %865 = vmatpush2.bf16.xpose.msra.mxu0 0
        %866 = vmatprep.subr.bf16.mxu0 0
        %867 = vmatpush2.bf16.xpose.msra.mxu0 0
        %868 = vmatprep.subr.bf16.mxu0 0
        %869 = vmatpush2.bf16.xpose.msra.mxu0 0
        %870 = vmatprep.subr.bf16.mxu0 0
        %871 = vmatpush2.bf16.xpose.msra.mxu0 0
        %872 = vmatprep.subr.bf16.mxu0 0
        %873 = vmatpush2.bf16.xpose.msra.mxu0 0
        %874 = vmatprep.mubr.bf16.mxu0 0
        %875 = vmatmul.mubr.bf16.gmra.mxu0 %v837
        %v876 = vpop.f32.mrf.mxu0
        %v877 = vadd.f32 0.0, %v876
        %v878 = vpop.f32.mrf.mxu0
        %v879 = vpop.f32.mrf.mxu0
        %v880 = vpop.f32.mrf.mxu0
        %881 = vdwg.mxu0
        %v882 = vsel %vm549, %v877, -inf
        %883 = vmax.xlane.f32.xlu0 %v882
        %v884 = vpop.xlane.xlu0 %883
        %v885 = vsub.f32 %v877, %v884
        %v886 = vmul.f32 %v885, 1.442695
        %v887 = vpow.pop %v886
        %v888 = vsel %vm549, %v887, 0.0
        %889 = vadd.xlane.f32.xlu0 %v888
        %v890 = vpop.xlane.xlu0 %889
        %v891 = vrcp.pop %v890
        %v892 = vmul.f32 %v887, %v891
        %v893 = vpack.c.bf16 %v892, %v892
        %894 = vrot.lane.b32.xlu0 %v501, 116
        %v895 = vpop.permute.xlu0 %894
        %v897 = vsel %vm549, %v893, 0
        %v900 = vsel %vm565, %v895, 0
        %902 = vmatprep.subr.bf16.mxu0 0
        %903 = vmatpush1.bf16.msra.mxu0 0
        %904 = vmatprep.subr.bf16.mxu0 0
        %905 = vmatpush1.bf16.msra.mxu0 0
        %906 = vmatprep.subr.bf16.mxu0 0
        %907 = vmatpush1.bf16.msra.mxu0 0
        %908 = vmatprep.subr.bf16.mxu0 0
        %909 = vmatpush1.bf16.msra.mxu0 0
        %910 = vmatprep.subr.bf16.mxu0 0
        %911 = vmatpush1.bf16.msra.mxu0 0
        %912 = vmatprep.subr.bf16.mxu0 0
        %913 = vmatpush1.bf16.msra.mxu0 0
        %914 = vmatprep.subr.bf16.mxu0 0
        %915 = vmatpush1.bf16.msra.mxu0 0
        %916 = vmatprep.subr.bf16.mxu0 0
        %917 = vmatpush1.bf16.msra.mxu0 %v900
        %918 = vmatprep.subr.bf16.mxu0 0
        %919 = vmatpush2.bf16.msra.mxu0 0
        %920 = vmatprep.subr.bf16.mxu0 0
        %921 = vmatpush2.bf16.msra.mxu0 0
        %922 = vmatprep.subr.bf16.mxu0 0
        %923 = vmatpush2.bf16.msra.mxu0 0
        %924 = vmatprep.subr.bf16.mxu0 0
        %925 = vmatpush2.bf16.msra.mxu0 0
        %926 = vmatprep.subr.bf16.mxu0 0
        %927 = vmatpush2.bf16.msra.mxu0 0
        %928 = vmatprep.subr.bf16.mxu0 0
        %929 = vmatpush2.bf16.msra.mxu0 0
        %930 = vmatprep.subr.bf16.mxu0 0
        %931 = vmatpush2.bf16.msra.mxu0 0
        %932 = vmatprep.subr.bf16.mxu0 0
        %933 = vmatpush2.bf16.msra.mxu0 0
        %934 = vmatprep.mubr.bf16.mxu0 0
        %935 = vmatmul.mubr.bf16.gmra.mxu0 %v897
        %v936 = vpop.f32.mrf.mxu0
        %v937 = vadd.f32 0.0, %v936
        %v938 = vpop.f32.mrf.mxu0
        %v939 = vpop.f32.mrf.mxu0
        %v940 = vpop.f32.mrf.mxu0
        %941 = vdwg.mxu0
        %942 = vrot.lane.b32.xlu0 %v499, 112
        %v943 = vpop.permute.xlu0 %942
        %944 = vrot.lane.b32.xlu0 %v500, 112
        %v945 = vpop.permute.xlu0 %944
        %v947 = vsel %vm502, %v943, 0
        %v950 = vsel %vm502, %v945, 0
        %952 = vmatprep.subr.bf16.mxu0 0
        %953 = vmatpush1.bf16.xpose.msra.mxu0 0
        %954 = vmatprep.subr.bf16.mxu0 0
        %955 = vmatpush1.bf16.xpose.msra.mxu0 0
        %956 = vmatprep.subr.bf16.mxu0 0
        %957 = vmatpush1.bf16.xpose.msra.mxu0 0
        %958 = vmatprep.subr.bf16.mxu0 0
        %959 = vmatpush1.bf16.xpose.msra.mxu0 0
        %960 = vmatprep.subr.bf16.mxu0 0
        %961 = vmatpush1.bf16.xpose.msra.mxu0 0
        %962 = vmatprep.subr.bf16.mxu0 0
        %963 = vmatpush1.bf16.xpose.msra.mxu0 0
        %964 = vmatprep.subr.bf16.mxu0 0
        %965 = vmatpush1.bf16.xpose.msra.mxu0 0
        %966 = vmatprep.subr.bf16.mxu0 0
        %967 = vmatpush1.bf16.xpose.msra.mxu0 %v950
        %968 = vmatprep.subr.bf16.mxu0 0
        %969 = vmatpush2.bf16.xpose.msra.mxu0 0
        %970 = vmatprep.subr.bf16.mxu0 0
        %971 = vmatpush2.bf16.xpose.msra.mxu0 0
        %972 = vmatprep.subr.bf16.mxu0 0
        %973 = vmatpush2.bf16.xpose.msra.mxu0 0
        %974 = vmatprep.subr.bf16.mxu0 0
        %975 = vmatpush2.bf16.xpose.msra.mxu0 0
        %976 = vmatprep.subr.bf16.mxu0 0
        %977 = vmatpush2.bf16.xpose.msra.mxu0 0
        %978 = vmatprep.subr.bf16.mxu0 0
        %979 = vmatpush2.bf16.xpose.msra.mxu0 0
        %980 = vmatprep.subr.bf16.mxu0 0
        %981 = vmatpush2.bf16.xpose.msra.mxu0 0
        %982 = vmatprep.subr.bf16.mxu0 0
        %983 = vmatpush2.bf16.xpose.msra.mxu0 0
        %984 = vmatprep.mubr.bf16.mxu0 0
        %985 = vmatmul.mubr.bf16.gmra.mxu0 %v947
        %v986 = vpop.f32.mrf.mxu0
        %v987 = vadd.f32 0.0, %v986
        %v988 = vpop.f32.mrf.mxu0
        %v989 = vpop.f32.mrf.mxu0
        %v990 = vpop.f32.mrf.mxu0
        %991 = vdwg.mxu0
        %v992 = vsel %vm549, %v987, -inf
        %993 = vmax.xlane.f32.xlu0 %v992
        %v994 = vpop.xlane.xlu0 %993
        %v995 = vsub.f32 %v987, %v994
        %v996 = vmul.f32 %v995, 1.442695
        %v997 = vpow.pop %v996
        %v998 = vsel %vm549, %v997, 0.0
        %999 = vadd.xlane.f32.xlu0 %v998
        %v1000 = vpop.xlane.xlu0 %999
        %v1001 = vrcp.pop %v1000
        %v1002 = vmul.f32 %v997, %v1001
        %v1003 = vpack.c.bf16 %v1002, %v1002
        %1004 = vrot.lane.b32.xlu0 %v501, 112
        %v1005 = vpop.permute.xlu0 %1004
        %v1007 = vsel %vm549, %v1003, 0
        %v1010 = vsel %vm565, %v1005, 0
        %1012 = vmatprep.subr.bf16.mxu0 0
        %1013 = vmatpush1.bf16.msra.mxu0 0
        %1014 = vmatprep.subr.bf16.mxu0 0
        %1015 = vmatpush1.bf16.msra.mxu0 0
        %1016 = vmatprep.subr.bf16.mxu0 0
        %1017 = vmatpush1.bf16.msra.mxu0 0
        %1018 = vmatprep.subr.bf16.mxu0 0
        %1019 = vmatpush1.bf16.msra.mxu0 0
        %1020 = vmatprep.subr.bf16.mxu0 0
        %1021 = vmatpush1.bf16.msra.mxu0 0
        %1022 = vmatprep.subr.bf16.mxu0 0
        %1023 = vmatpush1.bf16.msra.mxu0 0
        %1024 = vmatprep.subr.bf16.mxu0 0
        %1025 = vmatpush1.bf16.msra.mxu0 0
        %1026 = vmatprep.subr.bf16.mxu0 0
        %1027 = vmatpush1.bf16.msra.mxu0 %v1010
        %1028 = vmatprep.subr.bf16.mxu0 0
        %1029 = vmatpush2.bf16.msra.mxu0 0
        %1030 = vmatprep.subr.bf16.mxu0 0
        %1031 = vmatpush2.bf16.msra.mxu0 0
        %1032 = vmatprep.subr.bf16.mxu0 0
        %1033 = vmatpush2.bf16.msra.mxu0 0
        %1034 = vmatprep.subr.bf16.mxu0 0
        %1035 = vmatpush2.bf16.msra.mxu0 0
        %1036 = vmatprep.subr.bf16.mxu0 0
        %1037 = vmatpush2.bf16.msra.mxu0 0
        %1038 = vmatprep.subr.bf16.mxu0 0
        %1039 = vmatpush2.bf16.msra.mxu0 0
        %1040 = vmatprep.subr.bf16.mxu0 0
        %1041 = vmatpush2.bf16.msra.mxu0 0
        %1042 = vmatprep.subr.bf16.mxu0 0
        %1043 = vmatpush2.bf16.msra.mxu0 0
        %1044 = vmatprep.mubr.bf16.mxu0 0
        %1045 = vmatmul.mubr.bf16.gmra.mxu0 %v1007
        %v1046 = vpop.f32.mrf.mxu0
        %v1047 = vadd.f32 0.0, %v1046
        %v1048 = vpop.f32.mrf.mxu0
        %v1049 = vpop.f32.mrf.mxu0
        %v1050 = vpop.f32.mrf.mxu0
        %1051 = vdwg.mxu0
        %1052 = vrot.lane.b32.xlu0 %v499, 108
        %v1053 = vpop.permute.xlu0 %1052
        %1054 = vrot.lane.b32.xlu0 %v500, 108
        %v1055 = vpop.permute.xlu0 %1054
        %v1057 = vsel %vm502, %v1053, 0
        %v1060 = vsel %vm502, %v1055, 0
        %1062 = vmatprep.subr.bf16.mxu0 0
        %1063 = vmatpush1.bf16.xpose.msra.mxu0 0
        %1064 = vmatprep.subr.bf16.mxu0 0
        %1065 = vmatpush1.bf16.xpose.msra.mxu0 0
        %1066 = vmatprep.subr.bf16.mxu0 0
        %1067 = vmatpush1.bf16.xpose.msra.mxu0 0
        %1068 = vmatprep.subr.bf16.mxu0 0
        %1069 = vmatpush1.bf16.xpose.msra.mxu0 0
        %1070 = vmatprep.subr.bf16.mxu0 0
        %1071 = vmatpush1.bf16.xpose.msra.mxu0 0
        %1072 = vmatprep.subr.bf16.mxu0 0
        %1073 = vmatpush1.bf16.xpose.msra.mxu0 0
        %1074 = vmatprep.subr.bf16.mxu0 0
        %1075 = vmatpush1.bf16.xpose.msra.mxu0 0
        %1076 = vmatprep.subr.bf16.mxu0 0
        %1077 = vmatpush1.bf16.xpose.msra.mxu0 %v1060
        %1078 = vmatprep.subr.bf16.mxu0 0
        %1079 = vmatpush2.bf16.xpose.msra.mxu0 0
        %1080 = vmatprep.subr.bf16.mxu0 0
        %1081 = vmatpush2.bf16.xpose.msra.mxu0 0
        %1082 = vmatprep.subr.bf16.mxu0 0
        %1083 = vmatpush2.bf16.xpose.msra.mxu0 0
        %1084 = vmatprep.subr.bf16.mxu0 0
        %1085 = vmatpush2.bf16.xpose.msra.mxu0 0
        %1086 = vmatprep.subr.bf16.mxu0 0
        %1087 = vmatpush2.bf16.xpose.msra.mxu0 0
        %1088 = vmatprep.subr.bf16.mxu0 0
        %1089 = vmatpush2.bf16.xpose.msra.mxu0 0
        %1090 = vmatprep.subr.bf16.mxu0 0
        %1091 = vmatpush2.bf16.xpose.msra.mxu0 0
        %1092 = vmatprep.subr.bf16.mxu0 0
        %1093 = vmatpush2.bf16.xpose.msra.mxu0 0
        %1094 = vmatprep.mubr.bf16.mxu0 0
        %1095 = vmatmul.mubr.bf16.gmra.mxu0 %v1057
        %v1096 = vpop.f32.mrf.mxu0
        %v1097 = vadd.f32 0.0, %v1096
        %v1098 = vpop.f32.mrf.mxu0
        %v1099 = vpop.f32.mrf.mxu0
        %v1100 = vpop.f32.mrf.mxu0
        %1101 = vdwg.mxu0
        %v1102 = vsel %vm549, %v1097, -inf
        %1103 = vmax.xlane.f32.xlu0 %v1102
        %v1104 = vpop.xlane.xlu0 %1103
        %v1105 = vsub.f32 %v1097, %v1104
        %v1106 = vmul.f32 %v1105, 1.442695
        %v1107 = vpow.pop %v1106
        %v1108 = vsel %vm549, %v1107, 0.0
        %1109 = vadd.xlane.f32.xlu0 %v1108
        %v1110 = vpop.xlane.xlu0 %1109
        %v1111 = vrcp.pop %v1110
        %v1112 = vmul.f32 %v1107, %v1111
        %v1113 = vpack.c.bf16 %v1112, %v1112
        %1114 = vrot.lane.b32.xlu0 %v501, 108
        %v1115 = vpop.permute.xlu0 %1114
        %v1117 = vsel %vm549, %v1113, 0
        %v1120 = vsel %vm565, %v1115, 0
        %1122 = vmatprep.subr.bf16.mxu0 0
        %1123 = vmatpush1.bf16.msra.mxu0 0
        %1124 = vmatprep.subr.bf16.mxu0 0
        %1125 = vmatpush1.bf16.msra.mxu0 0
        %1126 = vmatprep.subr.bf16.mxu0 0
        %1127 = vmatpush1.bf16.msra.mxu0 0
        %1128 = vmatprep.subr.bf16.mxu0 0
        %1129 = vmatpush1.bf16.msra.mxu0 0
        %1130 = vmatprep.subr.bf16.mxu0 0
        %1131 = vmatpush1.bf16.msra.mxu0 0
        %1132 = vmatprep.subr.bf16.mxu0 0
        %1133 = vmatpush1.bf16.msra.mxu0 0
        %1134 = vmatprep.subr.bf16.mxu0 0
        %1135 = vmatpush1.bf16.msra.mxu0 0
        %1136 = vmatprep.subr.bf16.mxu0 0
        %1137 = vmatpush1.bf16.msra.mxu0 %v1120
        %1138 = vmatprep.subr.bf16.mxu0 0
        %1139 = vmatpush2.bf16.msra.mxu0 0
        %1140 = vmatprep.subr.bf16.mxu0 0
        %1141 = vmatpush2.bf16.msra.mxu0 0
        %1142 = vmatprep.subr.bf16.mxu0 0
        %1143 = vmatpush2.bf16.msra.mxu0 0
        %1144 = vmatprep.subr.bf16.mxu0 0
        %1145 = vmatpush2.bf16.msra.mxu0 0
        %1146 = vmatprep.subr.bf16.mxu0 0
        %1147 = vmatpush2.bf16.msra.mxu0 0
        %1148 = vmatprep.subr.bf16.mxu0 0
        %1149 = vmatpush2.bf16.msra.mxu0 0
        %1150 = vmatprep.subr.bf16.mxu0 0
        %1151 = vmatpush2.bf16.msra.mxu0 0
        %1152 = vmatprep.subr.bf16.mxu0 0
        %1153 = vmatpush2.bf16.msra.mxu0 0
        %1154 = vmatprep.mubr.bf16.mxu0 0
        %1155 = vmatmul.mubr.bf16.gmra.mxu0 %v1117
        %v1156 = vpop.f32.mrf.mxu0
        %v1157 = vadd.f32 0.0, %v1156
        %v1158 = vpop.f32.mrf.mxu0
        %v1159 = vpop.f32.mrf.mxu0
        %v1160 = vpop.f32.mrf.mxu0
        %1161 = vdwg.mxu0
        %1162 = vrot.lane.b32.xlu0 %v499, 104
        %v1163 = vpop.permute.xlu0 %1162
        %1164 = vrot.lane.b32.xlu0 %v500, 104
        %v1165 = vpop.permute.xlu0 %1164
        %v1167 = vsel %vm502, %v1163, 0
        %v1170 = vsel %vm502, %v1165, 0
        %1172 = vmatprep.subr.bf16.mxu0 0
        %1173 = vmatpush1.bf16.xpose.msra.mxu0 0
        %1174 = vmatprep.subr.bf16.mxu0 0
        %1175 = vmatpush1.bf16.xpose.msra.mxu0 0
        %1176 = vmatprep.subr.bf16.mxu0 0
        %1177 = vmatpush1.bf16.xpose.msra.mxu0 0
        %1178 = vmatprep.subr.bf16.mxu0 0
        %1179 = vmatpush1.bf16.xpose.msra.mxu0 0
        %1180 = vmatprep.subr.bf16.mxu0 0
        %1181 = vmatpush1.bf16.xpose.msra.mxu0 0
        %1182 = vmatprep.subr.bf16.mxu0 0
        %1183 = vmatpush1.bf16.xpose.msra.mxu0 0
        %1184 = vmatprep.subr.bf16.mxu0 0
        %1185 = vmatpush1.bf16.xpose.msra.mxu0 0
        %1186 = vmatprep.subr.bf16.mxu0 0
        %1187 = vmatpush1.bf16.xpose.msra.mxu0 %v1170
        %1188 = vmatprep.subr.bf16.mxu0 0
        %1189 = vmatpush2.bf16.xpose.msra.mxu0 0
        %1190 = vmatprep.subr.bf16.mxu0 0
        %1191 = vmatpush2.bf16.xpose.msra.mxu0 0
        %1192 = vmatprep.subr.bf16.mxu0 0
        %1193 = vmatpush2.bf16.xpose.msra.mxu0 0
        %1194 = vmatprep.subr.bf16.mxu0 0
        %1195 = vmatpush2.bf16.xpose.msra.mxu0 0
        %1196 = vmatprep.subr.bf16.mxu0 0
        %1197 = vmatpush2.bf16.xpose.msra.mxu0 0
        %1198 = vmatprep.subr.bf16.mxu0 0
        %1199 = vmatpush2.bf16.xpose.msra.mxu0 0
        %1200 = vmatprep.subr.bf16.mxu0 0
        %1201 = vmatpush2.bf16.xpose.msra.mxu0 0
        %1202 = vmatprep.subr.bf16.mxu0 0
        %1203 = vmatpush2.bf16.xpose.msra.mxu0 0
        %1204 = vmatprep.mubr.bf16.mxu0 0
        %1205 = vmatmul.mubr.bf16.gmra.mxu0 %v1167
        %v1206 = vpop.f32.mrf.mxu0
        %v1207 = vadd.f32 0.0, %v1206
        %v1208 = vpop.f32.mrf.mxu0
        %v1209 = vpop.f32.mrf.mxu0
        %v1210 = vpop.f32.mrf.mxu0
        %1211 = vdwg.mxu0
        %v1212 = vsel %vm549, %v1207, -inf
        %1213 = vmax.xlane.f32.xlu0 %v1212
        %v1214 = vpop.xlane.xlu0 %1213
        %v1215 = vsub.f32 %v1207, %v1214
        %v1216 = vmul.f32 %v1215, 1.442695
        %v1217 = vpow.pop %v1216
        %v1218 = vsel %vm549, %v1217, 0.0
        %1219 = vadd.xlane.f32.xlu0 %v1218
        %v1220 = vpop.xlane.xlu0 %1219
        %v1221 = vrcp.pop %v1220
        %v1222 = vmul.f32 %v1217, %v1221
        %v1223 = vpack.c.bf16 %v1222, %v1222
        %1224 = vrot.lane.b32.xlu0 %v501, 104
        %v1225 = vpop.permute.xlu0 %1224
        %v1227 = vsel %vm549, %v1223, 0
        %v1230 = vsel %vm565, %v1225, 0
        %1232 = vmatprep.subr.bf16.mxu0 0
        %1233 = vmatpush1.bf16.msra.mxu0 0
        %1234 = vmatprep.subr.bf16.mxu0 0
        %1235 = vmatpush1.bf16.msra.mxu0 0
        %1236 = vmatprep.subr.bf16.mxu0 0
        %1237 = vmatpush1.bf16.msra.mxu0 0
        %1238 = vmatprep.subr.bf16.mxu0 0
        %1239 = vmatpush1.bf16.msra.mxu0 0
        %1240 = vmatprep.subr.bf16.mxu0 0
        %1241 = vmatpush1.bf16.msra.mxu0 0
        %1242 = vmatprep.subr.bf16.mxu0 0
        %1243 = vmatpush1.bf16.msra.mxu0 0
        %1244 = vmatprep.subr.bf16.mxu0 0
        %1245 = vmatpush1.bf16.msra.mxu0 0
        %1246 = vmatprep.subr.bf16.mxu0 0
        %1247 = vmatpush1.bf16.msra.mxu0 %v1230
        %1248 = vmatprep.subr.bf16.mxu0 0
        %1249 = vmatpush2.bf16.msra.mxu0 0
        %1250 = vmatprep.subr.bf16.mxu0 0
        %1251 = vmatpush2.bf16.msra.mxu0 0
        %1252 = vmatprep.subr.bf16.mxu0 0
        %1253 = vmatpush2.bf16.msra.mxu0 0
        %1254 = vmatprep.subr.bf16.mxu0 0
        %1255 = vmatpush2.bf16.msra.mxu0 0
        %1256 = vmatprep.subr.bf16.mxu0 0
        %1257 = vmatpush2.bf16.msra.mxu0 0
        %1258 = vmatprep.subr.bf16.mxu0 0
        %1259 = vmatpush2.bf16.msra.mxu0 0
        %1260 = vmatprep.subr.bf16.mxu0 0
        %1261 = vmatpush2.bf16.msra.mxu0 0
        %1262 = vmatprep.subr.bf16.mxu0 0
        %1263 = vmatpush2.bf16.msra.mxu0 0
        %1264 = vmatprep.mubr.bf16.mxu0 0
        %1265 = vmatmul.mubr.bf16.gmra.mxu0 %v1227
        %v1266 = vpop.f32.mrf.mxu0
        %v1267 = vadd.f32 0.0, %v1266
        %v1268 = vpop.f32.mrf.mxu0
        %v1269 = vpop.f32.mrf.mxu0
        %v1270 = vpop.f32.mrf.mxu0
        %1271 = vdwg.mxu0
        %1272 = vrot.lane.b32.xlu0 %v499, 100
        %v1273 = vpop.permute.xlu0 %1272
        %1274 = vrot.lane.b32.xlu0 %v500, 100
        %v1275 = vpop.permute.xlu0 %1274
        %v1277 = vsel %vm502, %v1273, 0
        %v1280 = vsel %vm502, %v1275, 0
        %1282 = vmatprep.subr.bf16.mxu0 0
        %1283 = vmatpush1.bf16.xpose.msra.mxu0 0
        %1284 = vmatprep.subr.bf16.mxu0 0
        %1285 = vmatpush1.bf16.xpose.msra.mxu0 0
        %1286 = vmatprep.subr.bf16.mxu0 0
        %1287 = vmatpush1.bf16.xpose.msra.mxu0 0
        %1288 = vmatprep.subr.bf16.mxu0 0
        %1289 = vmatpush1.bf16.xpose.msra.mxu0 0
        %1290 = vmatprep.subr.bf16.mxu0 0
        %1291 = vmatpush1.bf16.xpose.msra.mxu0 0
        %1292 = vmatprep.subr.bf16.mxu0 0
        %1293 = vmatpush1.bf16.xpose.msra.mxu0 0
        %1294 = vmatprep.subr.bf16.mxu0 0
        %1295 = vmatpush1.bf16.xpose.msra.mxu0 0
        %1296 = vmatprep.subr.bf16.mxu0 0
        %1297 = vmatpush1.bf16.xpose.msra.mxu0 %v1280
        %1298 = vmatprep.subr.bf16.mxu0 0
        %1299 = vmatpush2.bf16.xpose.msra.mxu0 0
        %1300 = vmatprep.subr.bf16.mxu0 0
        %1301 = vmatpush2.bf16.xpose.msra.mxu0 0
        %1302 = vmatprep.subr.bf16.mxu0 0
        %1303 = vmatpush2.bf16.xpose.msra.mxu0 0
        %1304 = vmatprep.subr.bf16.mxu0 0
        %1305 = vmatpush2.bf16.xpose.msra.mxu0 0
        %1306 = vmatprep.subr.bf16.mxu0 0
        %1307 = vmatpush2.bf16.xpose.msra.mxu0 0
        %1308 = vmatprep.subr.bf16.mxu0 0
        %1309 = vmatpush2.bf16.xpose.msra.mxu0 0
        %1310 = vmatprep.subr.bf16.mxu0 0
        %1311 = vmatpush2.bf16.xpose.msra.mxu0 0
        %1312 = vmatprep.subr.bf16.mxu0 0
        %1313 = vmatpush2.bf16.xpose.msra.mxu0 0
        %1314 = vmatprep.mubr.bf16.mxu0 0
        %1315 = vmatmul.mubr.bf16.gmra.mxu0 %v1277
        %v1316 = vpop.f32.mrf.mxu0
        %v1317 = vadd.f32 0.0, %v1316
        %v1318 = vpop.f32.mrf.mxu0
        %v1319 = vpop.f32.mrf.mxu0
        %v1320 = vpop.f32.mrf.mxu0
        %1321 = vdwg.mxu0
        %v1322 = vsel %vm549, %v1317, -inf
        %1323 = vmax.xlane.f32.xlu0 %v1322
        %v1324 = vpop.xlane.xlu0 %1323
        %v1325 = vsub.f32 %v1317, %v1324
        %v1326 = vmul.f32 %v1325, 1.442695
        %v1327 = vpow.pop %v1326
        %v1328 = vsel %vm549, %v1327, 0.0
        %1329 = vadd.xlane.f32.xlu0 %v1328
        %v1330 = vpop.xlane.xlu0 %1329
        %v1331 = vrcp.pop %v1330
        %v1332 = vmul.f32 %v1327, %v1331
        %v1333 = vpack.c.bf16 %v1332, %v1332
        %1334 = vrot.lane.b32.xlu0 %v501, 100
        %v1335 = vpop.permute.xlu0 %1334
        %v1337 = vsel %vm549, %v1333, 0
        %v1340 = vsel %vm565, %v1335, 0
        %1342 = vmatprep.subr.bf16.mxu0 0
        %1343 = vmatpush1.bf16.msra.mxu0 0
        %1344 = vmatprep.subr.bf16.mxu0 0
        %1345 = vmatpush1.bf16.msra.mxu0 0
        %1346 = vmatprep.subr.bf16.mxu0 0
        %1347 = vmatpush1.bf16.msra.mxu0 0
        %1348 = vmatprep.subr.bf16.mxu0 0
        %1349 = vmatpush1.bf16.msra.mxu0 0
        %1350 = vmatprep.subr.bf16.mxu0 0
        %1351 = vmatpush1.bf16.msra.mxu0 0
        %1352 = vmatprep.subr.bf16.mxu0 0
        %1353 = vmatpush1.bf16.msra.mxu0 0
        %1354 = vmatprep.subr.bf16.mxu0 0
        %1355 = vmatpush1.bf16.msra.mxu0 0
        %1356 = vmatprep.subr.bf16.mxu0 0
        %1357 = vmatpush1.bf16.msra.mxu0 %v1340
        %1358 = vmatprep.subr.bf16.mxu0 0
        %1359 = vmatpush2.bf16.msra.mxu0 0
        %1360 = vmatprep.subr.bf16.mxu0 0
        %1361 = vmatpush2.bf16.msra.mxu0 0
        %1362 = vmatprep.subr.bf16.mxu0 0
        %1363 = vmatpush2.bf16.msra.mxu0 0
        %1364 = vmatprep.subr.bf16.mxu0 0
        %1365 = vmatpush2.bf16.msra.mxu0 0
        %1366 = vmatprep.subr.bf16.mxu0 0
        %1367 = vmatpush2.bf16.msra.mxu0 0
        %1368 = vmatprep.subr.bf16.mxu0 0
        %1369 = vmatpush2.bf16.msra.mxu0 0
        %1370 = vmatprep.subr.bf16.mxu0 0
        %1371 = vmatpush2.bf16.msra.mxu0 0
        %1372 = vmatprep.subr.bf16.mxu0 0
        %1373 = vmatpush2.bf16.msra.mxu0 0
        %1374 = vmatprep.mubr.bf16.mxu0 0
        %1375 = vmatmul.mubr.bf16.gmra.mxu0 %v1337
        %v1376 = vpop.f32.mrf.mxu0
        %v1377 = vadd.f32 0.0, %v1376
        %v1378 = vpop.f32.mrf.mxu0
        %v1379 = vpop.f32.mrf.mxu0
        %v1380 = vpop.f32.mrf.mxu0
        %1381 = vdwg.mxu0
        %1383 = vrot.lane.b32.xlu0 %v717, 4
        %v1384 = vpop.permute.xlu0 %1383
        %1387 = vrot.lane.b32.xlu0 %v827, 8
        %v1388 = vpop.permute.xlu0 %1387
        %1391 = vrot.lane.b32.xlu0 %v937, 12
        %v1392 = vpop.permute.xlu0 %1391
        %1395 = vrot.lane.b32.xlu0 %v1047, 16
        %v1396 = vpop.permute.xlu0 %1395
        %1399 = vrot.lane.b32.xlu0 %v1157, 20
        %v1400 = vpop.permute.xlu0 %1399
        %1403 = vrot.lane.b32.xlu0 %v1267, 24
        %v1404 = vpop.permute.xlu0 %1403
        %1407 = vrot.lane.b32.xlu0 %v1377, 28
        %v1408 = vpop.permute.xlu0 %1407
        %v1410 = vsel %vm502, %v604, %v1384
        %v1411 = vsel %vm549, %v1410, %v1388
        %vm1412 = vcmask 97280
        %v1413 = vsel %vm1412, %v1411, %v1392
        %vm1414 = vcmask 130048
        %v1415 = vsel %vm1414, %v1413, %v1396
        %vm1416 = vcmask 162816
        %v1417 = vsel %vm1416, %v1415, %v1400
        %vm1418 = vcmask 195584
        %v1419 = vsel %vm1418, %v1417, %v1404
        %vm1420 = vcmask 228352
        %v1421 = vsel %vm1420, %v1419, %v1408
        %v1422 = vpack.c.bf16 %v1421, %v1421
        %v1423 = vld [vmem:[#allocation10] sm:$0xf]
        %v1424 = vld [vmem:[#allocation10 + $0x4] sm:$0xf]
        %v1425 = vld [vmem:[#allocation10 + $0x8] sm:$0xf]
        %v1426 = vld [vmem:[#allocation10 + $0xc] sm:$0xf]
        %v1427 = vld [vmem:[%s5] sm:$0x1]
        %v1429 = vlaneseq
        %v1430 = vshrl.u32 %v1429, 7
        %v1431 = vsub.s32 0, %v1430
        %v1432 = vrot.slane %v1427, %v1431
        %v1438 = vunpack.c.l.b16 %v1423
        %v1439 = vunpack.c.l.b16 %v1424
        %v1440 = vunpack.c.l.b16 %v1425
        %v1441 = vunpack.c.l.b16 %v1426
        %v1442 = vpack.c.b16 %v1439, %v1438
        %v1443 = vpack.c.b16 %v1441, %v1440
        %v1447 = vsel %vm343, %v1422, 0
        %1449 = vmatprep.subr.bf16.mxu0 0
        %1450 = vmatpush1.bf16.msra.mxu0 0
        %1451 = vmatprep.subr.bf16.mxu0 0
        %1452 = vmatpush1.bf16.msra.mxu0 0
        %1453 = vmatprep.subr.bf16.mxu0 0
        %1454 = vmatpush1.bf16.msra.mxu0 0
        %1455 = vmatprep.subr.bf16.mxu0 0
        %1456 = vmatpush1.bf16.msra.mxu0 0
        %1457 = vmatprep.subr.bf16.mxu0 0
        %1458 = vmatpush1.bf16.msra.mxu0 0
        %1459 = vmatprep.subr.bf16.mxu0 0
        %1460 = vmatpush1.bf16.msra.mxu0 0
        %1461 = vmatprep.subr.bf16.mxu0 0
        %1462 = vmatpush1.bf16.msra.mxu0 %v1443
        %1463 = vmatprep.subr.bf16.mxu0 0
        %1464 = vmatpush1.bf16.msra.mxu0 %v1442
        %1465 = vmatprep.subr.bf16.mxu0 0
        %1466 = vmatpush2.bf16.msra.mxu0 0
        %1467 = vmatprep.subr.bf16.mxu0 0
        %1468 = vmatpush2.bf16.msra.mxu0 0
        %1469 = vmatprep.subr.bf16.mxu0 0
        %1470 = vmatpush2.bf16.msra.mxu0 0
        %1471 = vmatprep.subr.bf16.mxu0 0
        %1472 = vmatpush2.bf16.msra.mxu0 0
        %1473 = vmatprep.subr.bf16.mxu0 0
        %1474 = vmatpush2.bf16.msra.mxu0 0
        %1475 = vmatprep.subr.bf16.mxu0 0
        %1476 = vmatpush2.bf16.msra.mxu0 0
        %1477 = vmatprep.subr.bf16.mxu0 0
        %1478 = vmatpush2.bf16.msra.mxu0 0
        %1479 = vmatprep.subr.bf16.mxu0 0
        %1480 = vmatpush2.bf16.msra.mxu0 0
        %1481 = vmatprep.mubr.bf16.mxu0 0
        %1482 = vmatmul.mubr.bf16.gmra.mxu0 %v1447
        %v1483 = vpop.f32.mrf.mxu0
        %v1484 = vadd.f32 %v1432, %v1483
        %v1485 = vpop.f32.mrf.mxu0
        %v1486 = vpop.f32.mrf.mxu0
        %v1487 = vpop.f32.mrf.mxu0
        %1488 = vdwg.mxu0
        %1489 = vst.msk [vmem:[%s324] sm:$0xff] %vm343, %v1484
        %s1490 = sand.u32 %s164, 1
        %s1491 = scalar_lea.sflag [#allocation4], %s1490
        %s1492 = sand.u32 %s164, 1
        %s1493 = smul.addr %s1492, 8
        %s1494 = scalar_lea.vmem [#allocation11], %s1493
        // Predicated region
        $region65: #{tpu_custom_call.1} parent=43 // pred_check
          %p1495 = pneg %p174
        $region66: #{tpu_custom_call.1} parent=43 // pred_check_branch
          %1497 = sbr.rel (%p1495) target = $region68
        $region67: #{tpu_custom_call.1} parent=43 // pred_region
          %s1499 = ssub.s32 128, 128
          %1500 = vsyncadd %s1491, %s1499
          %s1501 = smul.addr %s25, 128
          %s1502 = scalar_lea.hbm %s6, %s1501
          %s1504 = sshll.u32 %s1494, 4
          %s1505 = int_to_ptr.vmem [resolvable:$true] %s1504
          %1507 = dma.vmem_to_hbm [thread:$0]  %s1505, 128, %s1502, %s1491
        $region68: #{tpu_custom_call.1} parent=43 // pred_fallthru
          _
      $region44: #{tpu_custom_call.1} parent=5 // pred_fallthru
        _
      %p1508 = scmp.le.s32.totalorder 2, %s20
      // Predicated region
      $region69: #{tpu_custom_call.1} parent=5 // pred_check
        %p1509 = pneg %p1508
      $region70: #{tpu_custom_call.1} parent=5 // pred_check_branch
        %1511 = sbr.rel (%p1509) target = $region72
      $region71: #{tpu_custom_call.1} parent=5 // pred_region
        %s1512 = ssub.s32 %s20, 2
        // Predicated region
        $region73: #{tpu_custom_call.1} parent=71 // pred_check
          %p1513 = pneg %p180
        $region74: #{tpu_custom_call.1} parent=71 // pred_check_branch
          %1515 = sbr.rel (%p1513) target = $region76
        $region75: #{tpu_custom_call.1} parent=71 // pred_region
          %s1516 = sand.u32 %s165, 1
          %s1517 = scalar_lea.sflag [#allocation4], %s1516
          %s1518 = sand.u32 %s165, 1
          %s1519 = smul.addr %s1518, 8
          %s1520 = scalar_lea.vmem [#allocation11], %s1519
          %1521 = dma.done %s1517, 128
        $region76: #{tpu_custom_call.1} parent=71 // pred_fallthru
          _
      $region72: #{tpu_custom_call.1} parent=5 // pred_fallthru
        _
    $region6: #{tpu_custom_call.1} parent=1 // loop_footer
      %s24 = sadd.s32 1, %s20
    $region7: #{tpu_custom_call.1} parent=1 // loop_footer_branch
      %19 = sbr.rel target = $region3
    $region8: #{tpu_custom_call.1} parent=1 // loop_exit
      _
    %1522 = vsyncpa [#allocation3], 1
    %s1523 = scalar_lea.sflag [#allocation3], 1
    %1524 = vsyncpa %s1523, 1
    %1525 = vsyncpa [#allocation6], 1
    %1526 = vsyncpa [#allocation9], 1
    %1527 = vsyncpa [#allocation4], 1
    %s1528 = scalar_lea.sflag [#allocation4], 1
    %1529 = vsyncpa %s1528, 1

</llo_original>
